<compile_context>
chip_gen: v6e
topology: v6e:2x2x1
jax: 0.10.0
libtpu: 0.0.40
codegen_flags: <defaults>
</compile_context>

<pallas_src>
import jax
import jax.numpy as jnp
from jax.experimental import pallas as pl
from jax.experimental.pallas import tpu as pltpu


def _round_up(x, m):
    return ((x + m - 1) // m) * m


def _pick_tb(B):
    """Choose an MXU-friendly batch tile.

    Preference order: (a) padding waste <= ~12.5%, (b) >= 2 grid steps (v7x has
    two TensorCores and the grid axis is "parallel"), (c) the largest tile
    (amortize ~0.35us per-grid-step overhead, fill the MXU M dimension).
    """
    Bp8 = _round_up(B, 8)
    if Bp8 <= 64:
        return Bp8                                   # tiny batch: one small tile
    cands = []
    for t in (512, 256, 128, 64):
        Bp = _round_up(B, t)
        cands.append((t, (Bp - B) / Bp, Bp // t))
    for t, waste, steps in cands:                    # largest low-waste tile, >=2 steps
        if waste <= 0.125 and steps >= 2:
            return t
    for t, waste, steps in cands:                    # largest low-waste tile
        if waste <= 0.125:
            return t
    return min(cands, key=lambda c: (c[1], -c[0]))[0]  # minimize padded MXU work


def _dnn_kernel(x_ref, w1_ref, b1_ref, w2_ref, b2_ref,
                gamma_ref, beta_ref, w3_ref, b3_ref, w4t_ref, b4_ref,
                o_ref):
    # x: (TB, E) bf16 tile; matmuls use bf16 operands + f32 accumulation,
    # all elementwise / LayerNorm / sigmoid math stays f32.
    x = x_ref[...]

    # ---- dnn: Linear(E, 2E) -> ReLU -> Linear(2E, E) ----
    h1 = jnp.dot(x, w1_ref[...], preferred_element_type=jnp.float32) + b1_ref[...]
    h1 = jnp.maximum(h1, 0.0).astype(jnp.bfloat16)   # fused ReLU + bf16 (one live copy of (TB, 2E))
    h2 = jnp.dot(h1, w2_ref[...], preferred_element_type=jnp.float32) + b2_ref[...]

    # ---- LayerNorm over last dim (eps = 1e-5), one-pass stats ----
    inv_e = 1.0 / h2.shape[-1]
    mu = jnp.sum(h2, axis=-1, keepdims=True) * inv_e
    var = jnp.sum(h2 * h2, axis=-1, keepdims=True) * inv_e - mu * mu
    var = jnp.maximum(var, 0.0)                      # guard one-pass cancellation
    xn = (h2 - mu) * jax.lax.rsqrt(var + 1e-5)
    xn = xn * gamma_ref[...] + beta_ref[...]

    # ---- Dropout(p=0.5): identity in eval/inference mode ----
    # TODO(synk): training-mode dropout (pltpu.prng_random_bits mask + 1/(1-p)) not implemented.

    # ---- out head: Linear(E, 128) -> ReLU -> Linear(128, 1) -> sigmoid ----
    h3 = jnp.dot(xn.astype(jnp.bfloat16), w3_ref[...],
                 preferred_element_type=jnp.float32) + b3_ref[...]
    h3 = jnp.maximum(h3, 0.0)
    # N=1 head on the VPU: multiply + lane reduction -> (TB,), stored lane-dense.
    logits = jnp.sum(h3 * w4t_ref[...], axis=-1)     # (TB,)
    row = logits[None, :] + b4_ref[...]              # (1, TB)
    o_ref[...] = jax.nn.sigmoid(row).reshape(o_ref.shape)   # lane-dense (1, 1, TB) store


def test_dnn_forward(feature, params, *, tb=None):
    """feature: (B, E) f32.  Returns (B,) f32 (sigmoid output, squeezed)."""
    B, E = feature.shape
    (w1, b1, w2, b2, gamma, beta, w3, b3, w4, b4) = params
    H = w1.shape[1]
    out_dim = w4.shape[1]
    assert out_dim == 1, "binary-class head (out_dim=1) only"

    if tb is None:
        tb = _pick_tb(B)
    else:
        tb = max(8, _round_up(min(tb, _round_up(B, 8)), 8))
    Bp = _round_up(B, tb)
    G = Bp // tb

    # bf16 feature stream (halves the only per-step HBM traffic); bf16 MXU weights.
    feat = feature.astype(jnp.bfloat16)
    if Bp != B:
        feat = jnp.pad(feat, ((0, Bp - B), (0, 0)))
    w1b = w1.astype(jnp.bfloat16)
    w2b = w2.astype(jnp.bfloat16)
    w3b = w3.astype(jnp.bfloat16)
    w4t = w4.T                                       # (1, 128) f32 row for the VPU path

    def wspec(shape):
        # Constant block index -> weight stays VMEM-resident across the grid;
        # single-buffered (it never changes) to halve its VMEM footprint.
        return pl.BlockSpec(shape, lambda i, _n=len(shape): (0,) * _n,
                            pipeline_mode=pl.Buffered(1))

    # Explicit VMEM budget: single-buffered bf16 weights + double-buffered
    # feature/output tiles + live f32/bf16 intermediates, with headroom.
    est = (2 * (w1b.size + w2b.size + w3b.size)
           + 4 * (b1.size + b2.size + gamma.size + beta.size + b3.size + w4t.size + b4.size)
           + 2 * 2 * tb * E                          # double-buffered bf16 feature tile
           + 2 * 4 * tb                              # double-buffered (1,1,tb) output row
           + 4 * tb * (H + E + 128 + 8)              # f32 intermediates (h1/h2/h3/stats)
           + 2 * tb * (H + E))                       # bf16 copies fed to the MXU
    vmem_limit = int(min(max(int(est * 1.5) + (4 << 20), 32 << 20), 64 << 20))

    out = pl.pallas_call(
        _dnn_kernel,
        out_shape=jax.ShapeDtypeStruct((G, 1, tb), jnp.float32),
        grid=(G,),
        in_specs=[
            pl.BlockSpec((tb, E), lambda i: (i, 0)),     # feature tile (auto-pipelined)
            wspec((E, H)), wspec((1, H)),                # w1, b1
            wspec((H, E)), wspec((1, E)),                # w2, b2
            wspec((1, E)), wspec((1, E)),                # gamma, beta
            wspec((E, 128)), wspec((1, 128)),            # w3, b3
            wspec((1, 128)), wspec((1, out_dim)),        # w4^T, b4
        ],
        out_specs=pl.BlockSpec((1, 1, tb), lambda i: (i, 0, 0)),
        compiler_params=pltpu.CompilerParams(
            dimension_semantics=("parallel",),
            vmem_limit_bytes=vmem_limit),
    )(feat, w1b, b1, w2b, b2, gamma, beta, w3b, b3, w4t, b4)

    return out.reshape(Bp)[:B]


def test_dnn_reference(feature, params):
    """Pure-JAX f32 reference (mirrors the PyTorch forward, eval mode)."""
    (w1, b1, w2, b2, gamma, beta, w3, b3, w4, b4) = params
    h = jnp.maximum(feature @ w1 + b1, 0.0)
    h = h @ w2 + b2
    mu = jnp.mean(h, axis=-1, keepdims=True)
    var = jnp.mean((h - mu) ** 2, axis=-1, keepdims=True)
    h = (h - mu) * jax.lax.rsqrt(var + 1e-5) * gamma + beta
    h = jnp.maximum(h @ w3 + b3, 0.0)
    logits = h @ w4 + b4
    return jax.nn.sigmoid(logits)[:, 0]


def init_params(key, num_embeds, out_dim=1):
    """Deterministic parameter init (shapes match the PyTorch module)."""
    ks = jax.random.split(key, 8)
    E, Hdim = num_embeds, 2 * num_embeds

    def lin(kw, kb, fan_in, fan_out):
        # uniform(-1/sqrt(fan_in), 1/sqrt(fan_in)), like torch.nn.Linear
        bound = 1.0 / jnp.sqrt(fan_in)
        w = jax.random.uniform(kw, (fan_in, fan_out), jnp.float32, -bound, bound)
        b = jax.random.uniform(kb, (1, fan_out), jnp.float32, -bound, bound)
        return w, b

    w1, b1 = lin(ks[0], ks[1], E, Hdim)        # Linear(E, 2E)
    w2, b2 = lin(ks[2], ks[3], Hdim, E)        # Linear(2E, E)
    gamma = jnp.ones((1, E), jnp.float32)      # LayerNorm weight
    beta = jnp.zeros((1, E), jnp.float32)      # LayerNorm bias
    w3, b3 = lin(ks[4], ks[5], E, 128)         # Linear(E, 128)
    w4, b4 = lin(ks[6], ks[7], 128, out_dim)   # Linear(128, out_dim)
    return (w1, b1, w2, b2, gamma, beta, w3, b3, w4, b4)


if __name__ == "__main__":
    # Small, layout-friendly shapes: E=256 (lane axis multiple of 128), B=20.
    B, E = 20, 256
    key = jax.random.PRNGKey(0)
    k_feat, k_params = jax.random.split(key)

    feature = jax.random.normal(k_feat, (B, E), jnp.float32)
    params = init_params(k_params, num_embeds=E, out_dim=1)

    y_ref = test_dnn_reference(feature, params)

    # Default tile selection (single 24-row tile for B=20).
    y = test_dnn_forward(feature, params)
    jax.block_until_ready(y)
    assert y.shape == (B,)
    assert bool(jnp.all((y >= 0.0) & (y <= 1.0)))
    err = float(jnp.max(jnp.abs(y - y_ref)))
    assert err < 2e-2, f"max abs err (default tile) vs f32 reference: {err}"

    # Explicit small tile: exercises a 3-step batch grid including a padded tile.
    y2 = test_dnn_forward(feature, params, tb=8)
    jax.block_until_ready(y2)
    err2 = float(jnp.max(jnp.abs(y2 - y_ref)))
    assert err2 < 2e-2, f"max abs err (tb=8) vs f32 reference: {err2}"

    print("KERNEL_OK")
</pallas_src>

<mosaic_0001>
module attributes {stable_mosaic.version = 11 : i64} {
  func.func @_dnn_kernel(%arg0: i32, %arg1: memref<24x256xbf16, #tpu.memory_space<vmem>>, %arg2: memref<256x512xbf16, #tpu.memory_space<vmem>>, %arg3: memref<1x512xf32, #tpu.memory_space<vmem>>, %arg4: memref<512x256xbf16, #tpu.memory_space<vmem>>, %arg5: memref<1x256xf32, #tpu.memory_space<vmem>>, %arg6: memref<1x256xf32, #tpu.memory_space<vmem>>, %arg7: memref<1x256xf32, #tpu.memory_space<vmem>>, %arg8: memref<256x128xbf16, #tpu.memory_space<vmem>>, %arg9: memref<1x128xf32, #tpu.memory_space<vmem>>, %arg10: memref<1x128xf32, #tpu.memory_space<vmem>>, %arg11: memref<1x1xf32, #tpu.memory_space<vmem>>, %arg12: memref<1x1x24xf32, #tpu.memory_space<vmem>>) attributes {dimension_semantics = [#tpu.dimension_semantics<parallel>], iteration_bounds = array<i64: 1>, scalar_prefetch = 0 : i64, scratch_operands = 0 : i64, tpu.core_type = #tpu.core_type<tc>, window_params = [{transform_indices = @transform_0, window_bounds = array<i64: 24, 256>}, {pipeline_mode = #tpu.pipeline_mode<synchronous>, transform_indices = @transform_1, window_bounds = array<i64: 256, 512>}, {pipeline_mode = #tpu.pipeline_mode<synchronous>, transform_indices = @transform_2, window_bounds = array<i64: 1, 512>}, {pipeline_mode = #tpu.pipeline_mode<synchronous>, transform_indices = @transform_3, window_bounds = array<i64: 512, 256>}, {pipeline_mode = #tpu.pipeline_mode<synchronous>, transform_indices = @transform_4, window_bounds = array<i64: 1, 256>}, {pipeline_mode = #tpu.pipeline_mode<synchronous>, transform_indices = @transform_5, window_bounds = array<i64: 1, 256>}, {pipeline_mode = #tpu.pipeline_mode<synchronous>, transform_indices = @transform_6, window_bounds = array<i64: 1, 256>}, {pipeline_mode = #tpu.pipeline_mode<synchronous>, transform_indices = @transform_7, window_bounds = array<i64: 256, 128>}, {pipeline_mode = #tpu.pipeline_mode<synchronous>, transform_indices = @transform_8, window_bounds = array<i64: 1, 128>}, {pipeline_mode = #tpu.pipeline_mode<synchronous>, transform_indices = @transform_9, window_bounds = array<i64: 1, 128>}, {pipeline_mode = #tpu.pipeline_mode<synchronous>, transform_indices = @transform_10, window_bounds = array<i64: 1, 1>}, {transform_indices = @transform_11, window_bounds = array<i64: 1, 1, 24>}]} {
    %c0 = arith.constant 0 : index
    %c0_0 = arith.constant 0 : index
    %0 = vector.load %arg1[%c0, %c0_0] : memref<24x256xbf16, #tpu.memory_space<vmem>>, vector<24x256xbf16>
    %c0_1 = arith.constant 0 : index
    %c0_2 = arith.constant 0 : index
    %1 = vector.load %arg2[%c0_1, %c0_2] : memref<256x512xbf16, #tpu.memory_space<vmem>>, vector<256x512xbf16>
    %cst = arith.constant dense<0.000000e+00> : vector<24x512xf32>
    %2 = tpu.matmul %0, %1, %cst {dimension_numbers = #tpu.dot_dimension_numbers<[1], [0], [0], [1], [0, 0, 1, 1], [], []>} : vector<24x256xbf16>, vector<256x512xbf16>, vector<24x512xf32> -> vector<24x512xf32>
    %c0_3 = arith.constant 0 : index
    %c0_4 = arith.constant 0 : index
    %3 = vector.load %arg3[%c0_3, %c0_4] : memref<1x512xf32, #tpu.memory_space<vmem>>, vector<1x512xf32>
    %4 = vector.broadcast %3 : vector<1x512xf32> to vector<24x512xf32>
    %5 = arith.addf %2, %4 : vector<24x512xf32>
    %cst_5 = arith.constant 0.000000e+00 : f32
    %6 = vector.broadcast %cst_5 : f32 to vector<24x512xf32>
    %7 = arith.maximumf %5, %6 : vector<24x512xf32>
    %8 = arith.truncf %7 : vector<24x512xf32> to vector<24x512xbf16>
    %c0_6 = arith.constant 0 : index
    %c0_7 = arith.constant 0 : index
    %9 = vector.load %arg4[%c0_6, %c0_7] : memref<512x256xbf16, #tpu.memory_space<vmem>>, vector<512x256xbf16>
    %cst_8 = arith.constant dense<0.000000e+00> : vector<24x256xf32>
    %10 = tpu.matmul %8, %9, %cst_8 {dimension_numbers = #tpu.dot_dimension_numbers<[1], [0], [0], [1], [0, 0, 1, 1], [], []>} : vector<24x512xbf16>, vector<512x256xbf16>, vector<24x256xf32> -> vector<24x256xf32>
    %c0_9 = arith.constant 0 : index
    %c0_10 = arith.constant 0 : index
    %11 = vector.load %arg5[%c0_9, %c0_10] : memref<1x256xf32, #tpu.memory_space<vmem>>, vector<1x256xf32>
    %12 = vector.broadcast %11 : vector<1x256xf32> to vector<24x256xf32>
    %13 = arith.addf %10, %12 : vector<24x256xf32>
    %cst_11 = arith.constant dense<0.000000e+00> : vector<24xf32>
    %14 = vector.multi_reduction <add>, %13, %cst_11 [1] : vector<24x256xf32> to vector<24xf32>
    %15 = vector.shape_cast %14 : vector<24xf32> to vector<24x1xf32>
    %cst_12 = arith.constant 3.906250e-03 : f32
    %16 = vector.broadcast %cst_12 : f32 to vector<24x1xf32>
    %17 = arith.mulf %15, %16 : vector<24x1xf32>
    %18 = arith.mulf %13, %13 : vector<24x256xf32>
    %cst_13 = arith.constant dense<0.000000e+00> : vector<24xf32>
    %19 = vector.multi_reduction <add>, %18, %cst_13 [1] : vector<24x256xf32> to vector<24xf32>
    %20 = vector.shape_cast %19 : vector<24xf32> to vector<24x1xf32>
    %cst_14 = arith.constant 3.906250e-03 : f32
    %21 = vector.broadcast %cst_14 : f32 to vector<24x1xf32>
    %22 = arith.mulf %20, %21 : vector<24x1xf32>
    %23 = arith.mulf %17, %17 : vector<24x1xf32>
    %24 = arith.subf %22, %23 : vector<24x1xf32>
    %cst_15 = arith.constant 0.000000e+00 : f32
    %25 = vector.broadcast %cst_15 : f32 to vector<24x1xf32>
    %26 = arith.maximumf %24, %25 : vector<24x1xf32>
    %27 = vector.broadcast %17 : vector<24x1xf32> to vector<24x256xf32>
    %28 = arith.subf %13, %27 : vector<24x256xf32>
    %cst_16 = arith.constant 9.99999974E-6 : f32
    %29 = vector.broadcast %cst_16 : f32 to vector<24x1xf32>
    %30 = arith.addf %26, %29 : vector<24x1xf32>
    %31 = math.rsqrt %30 : vector<24x1xf32>
    %32 = vector.broadcast %31 : vector<24x1xf32> to vector<24x256xf32>
    %33 = arith.mulf %28, %32 : vector<24x256xf32>
    %c0_17 = arith.constant 0 : index
    %c0_18 = arith.constant 0 : index
    %34 = vector.load %arg6[%c0_17, %c0_18] : memref<1x256xf32, #tpu.memory_space<vmem>>, vector<1x256xf32>
    %35 = vector.broadcast %34 : vector<1x256xf32> to vector<24x256xf32>
    %36 = arith.mulf %33, %35 : vector<24x256xf32>
    %c0_19 = arith.constant 0 : index
    %c0_20 = arith.constant 0 : index
    %37 = vector.load %arg7[%c0_19, %c0_20] : memref<1x256xf32, #tpu.memory_space<vmem>>, vector<1x256xf32>
    %38 = vector.broadcast %37 : vector<1x256xf32> to vector<24x256xf32>
    %39 = arith.addf %36, %38 : vector<24x256xf32>
    %40 = arith.truncf %39 : vector<24x256xf32> to vector<24x256xbf16>
    %c0_21 = arith.constant 0 : index
    %c0_22 = arith.constant 0 : index
    %41 = vector.load %arg8[%c0_21, %c0_22] : memref<256x128xbf16, #tpu.memory_space<vmem>>, vector<256x128xbf16>
    %cst_23 = arith.constant dense<0.000000e+00> : vector<24x128xf32>
    %42 = tpu.matmul %40, %41, %cst_23 {dimension_numbers = #tpu.dot_dimension_numbers<[1], [0], [0], [1], [0, 0, 1, 1], [], []>} : vector<24x256xbf16>, vector<256x128xbf16>, vector<24x128xf32> -> vector<24x128xf32>
    %c0_24 = arith.constant 0 : index
    %c0_25 = arith.constant 0 : index
    %43 = vector.load %arg9[%c0_24, %c0_25] : memref<1x128xf32, #tpu.memory_space<vmem>>, vector<1x128xf32>
    %44 = vector.broadcast %43 : vector<1x128xf32> to vector<24x128xf32>
    %45 = arith.addf %42, %44 : vector<24x128xf32>
    %cst_26 = arith.constant 0.000000e+00 : f32
    %46 = vector.broadcast %cst_26 : f32 to vector<24x128xf32>
    %47 = arith.maximumf %45, %46 : vector<24x128xf32>
    %c0_27 = arith.constant 0 : index
    %c0_28 = arith.constant 0 : index
    %48 = vector.load %arg10[%c0_27, %c0_28] : memref<1x128xf32, #tpu.memory_space<vmem>>, vector<1x128xf32>
    %49 = vector.broadcast %48 : vector<1x128xf32> to vector<24x128xf32>
    %50 = arith.mulf %47, %49 : vector<24x128xf32>
    %cst_29 = arith.constant dense<0.000000e+00> : vector<24xf32>
    %51 = vector.multi_reduction <add>, %50, %cst_29 [1] : vector<24x128xf32> to vector<24xf32>
    %52 = vector.shape_cast %51 : vector<24xf32> to vector<1x24xf32>
    %c0_30 = arith.constant 0 : index
    %c0_31 = arith.constant 0 : index
    %53 = vector.load %arg11[%c0_30, %c0_31] : memref<1x1xf32, #tpu.memory_space<vmem>>, vector<1x1xf32>
    %54 = vector.broadcast %53 : vector<1x1xf32> to vector<1x24xf32>
    %55 = arith.addf %52, %54 : vector<1x24xf32>
    %56 = arith.negf %55 : vector<1x24xf32>
    %57 = math.exp %56 : vector<1x24xf32>
    %cst_32 = arith.constant 1.000000e+00 : f32
    %58 = vector.broadcast %cst_32 : f32 to vector<1x24xf32>
    %59 = arith.addf %58, %57 : vector<1x24xf32>
    %60 = arith.divf %58, %59 : vector<1x24xf32>
    %61 = vector.shape_cast %60 : vector<1x24xf32> to vector<1x1x24xf32>
    %c0_33 = arith.constant 0 : index
    %c0_34 = arith.constant 0 : index
    %c0_35 = arith.constant 0 : index
    %62 = vector.load %arg12[%c0_33, %c0_34, %c0_35] : memref<1x1x24xf32, #tpu.memory_space<vmem>>, vector<1x1x24xf32>
    tpu.vector_store %arg12[%c0_33, %c0_34, %c0_35], %61 {strides = array<i32>} : memref<1x1x24xf32, #tpu.memory_space<vmem>>, vector<1x1x24xf32>,
    return
  }
  func.func @transform_0(%arg0: i32) -> (i32, i32) {
    %c0_i32 = arith.constant 0 : i32
    %c0_i32_0 = arith.constant 0 : i32
    return %arg0, %c0_i32 : i32, i32
  }
  func.func @transform_1(%arg0: i32) -> (i32, i32) {
    %c0_i32 = arith.constant 0 : i32
    %c0_i32_0 = arith.constant 0 : i32
    %c0_i32_1 = arith.constant 0 : i32
    return %c0_i32, %c0_i32_0 : i32, i32
  }
  func.func @transform_2(%arg0: i32) -> (i32, i32) {
    %c0_i32 = arith.constant 0 : i32
    %c0_i32_0 = arith.constant 0 : i32
    %c0_i32_1 = arith.constant 0 : i32
    return %c0_i32, %c0_i32_0 : i32, i32
  }
  func.func @transform_3(%arg0: i32) -> (i32, i32) {
    %c0_i32 = arith.constant 0 : i32
    %c0_i32_0 = arith.constant 0 : i32
    %c0_i32_1 = arith.constant 0 : i32
    return %c0_i32, %c0_i32_0 : i32, i32
  }
  func.func @transform_4(%arg0: i32) -> (i32, i32) {
    %c0_i32 = arith.constant 0 : i32
    %c0_i32_0 = arith.constant 0 : i32
    %c0_i32_1 = arith.constant 0 : i32
    return %c0_i32, %c0_i32_0 : i32, i32
  }
  func.func @transform_5(%arg0: i32) -> (i32, i32) {
    %c0_i32 = arith.constant 0 : i32
    %c0_i32_0 = arith.constant 0 : i32
    %c0_i32_1 = arith.constant 0 : i32
    return %c0_i32, %c0_i32_0 : i32, i32
  }
  func.func @transform_6(%arg0: i32) -> (i32, i32) {
    %c0_i32 = arith.constant 0 : i32
    %c0_i32_0 = arith.constant 0 : i32
    %c0_i32_1 = arith.constant 0 : i32
    return %c0_i32, %c0_i32_0 : i32, i32
  }
  func.func @transform_7(%arg0: i32) -> (i32, i32) {
    %c0_i32 = arith.constant 0 : i32
    %c0_i32_0 = arith.constant 0 : i32
    %c0_i32_1 = arith.constant 0 : i32
    return %c0_i32, %c0_i32_0 : i32, i32
  }
  func.func @transform_8(%arg0: i32) -> (i32, i32) {
    %c0_i32 = arith.constant 0 : i32
    %c0_i32_0 = arith.constant 0 : i32
    %c0_i32_1 = arith.constant 0 : i32
    return %c0_i32, %c0_i32_0 : i32, i32
  }
  func.func @transform_9(%arg0: i32) -> (i32, i32) {
    %c0_i32 = arith.constant 0 : i32
    %c0_i32_0 = arith.constant 0 : i32
    %c0_i32_1 = arith.constant 0 : i32
    return %c0_i32, %c0_i32_0 : i32, i32
  }
  func.func @transform_10(%arg0: i32) -> (i32, i32) {
    %c0_i32 = arith.constant 0 : i32
    %c0_i32_0 = arith.constant 0 : i32
    %c0_i32_1 = arith.constant 0 : i32
    return %c0_i32, %c0_i32_0 : i32, i32
  }
  func.func @transform_11(%arg0: i32) -> (i32, i32, i32) {
    %c0_i32 = arith.constant 0 : i32
    %c0_i32_0 = arith.constant 0 : i32
    %c0_i32_1 = arith.constant 0 : i32
    return %arg0, %c0_i32, %c0_i32_0 : i32, i32, i32
  }
}

</mosaic_0001>

<llo_original>
// kernel: tpu_custom_call.1
$region0: #{tpu_custom_call.1}
  #allocation0 [shape = 'u32[]', space=smem, size = 0x4, offset = 0x4, fixed_abs, tag = 'smem constant byte address 0x4 - core index']
  #allocation1 [shape = 'u32[144,128]{1,0:T(1,128)}', space=vmem, size = 0x12000, scoped, tag = 'internal scratch']
  #allocation2 [shape = 'f32[1,1]{1,0:T(1,128)S(1)}', space=vmem, size = 0x200, scoped, tag = 'scoped memory for tpu_custom_call.1']
  %s0 = inlined_call_operand.hbm [shape: bf16[24,256], index: 0, kind: input, shape index: {}]
  %s1 = inlined_call_operand.hbm [shape: bf16[256,512], index: 1, kind: input, shape index: {}]
  %s2 = inlined_call_operand.vmem [shape: f32[1,512], index: 2, kind: input, shape index: {}]
  %s3 = inlined_call_operand.hbm [shape: bf16[512,256], index: 3, kind: input, shape index: {}]
  %s4 = inlined_call_operand.vmem [shape: f32[1,256], index: 4, kind: input, shape index: {}]
  %s5 = inlined_call_operand.vmem [shape: f32[1,256], index: 5, kind: input, shape index: {}]
  %s6 = inlined_call_operand.vmem [shape: f32[1,256], index: 6, kind: input, shape index: {}]
  %s7 = inlined_call_operand.hbm [shape: bf16[256,128], index: 7, kind: input, shape index: {}]
  %s8 = inlined_call_operand.vmem [shape: f32[1,128], index: 8, kind: input, shape index: {}]
  %s9 = inlined_call_operand.vmem [shape: f32[1,128], index: 9, kind: input, shape index: {}]
  %s10 = inlined_call_operand.<no memory space> [shape: f32[1,1], index: 10, kind: input, shape index: {}]
  %s11 = inlined_call_operand.hbm [shape: f32[1,1,24], index: 11, kind: output, shape index: {}]
  %s12 = sld [smem:[#allocation0]]
  $region70: #{tpu_custom_call.1} parent=0
    _
  %s14 = ssub.s32 1, %s12
  %s15 = scalar_select 0, %s14, %s12
  %v16 = vstv %s10
  %17 = vst [vmem:[#allocation2] sm:$0x1] %v16
  $region1: #{tpu_custom_call.1} parent=0
    #allocation3 [shape = 'u8[12288]{0}', space=vmem, size = 0x3000, scoped, tag = 'input window, operand 0, single buffered']
    #allocation4 [shape = 's32[1]{0}', space=sflag, size = 0x4, scoped, tag = 'scoped memory for tpu_custom_call.1']
    #allocation5 [shape = 's32[1]{0}', space=sflag, size = 0x4, scoped, tag = 'scoped memory for tpu_custom_call.1']
    #allocation6 [shape = 'u8[262144]{0}', space=vmem, size = 0x40000, scoped, tag = 'input window, operand 1, single buffered']
    #allocation7 [shape = 's32[1]{0}', space=sflag, size = 0x4, scoped, tag = 'scoped memory for tpu_custom_call.1']
    #allocation8 [shape = 'u8[262144]{0}', space=vmem, size = 0x40000, scoped, tag = 'input window, operand 3, single buffered']
    #allocation9 [shape = 'u8[65536]{0}', space=vmem, size = 0x10000, scoped, tag = 'input window, operand 7, single buffered']
    #allocation10 [shape = 's32[1]{0}', space=sflag, size = 0x4, scoped, tag = 'scoped memory for tpu_custom_call.1']
    #allocation11 [shape = 'u8[512]{0}', space=vmem, size = 0x400, scoped, tag = 'output window, operand 0, single buffered']
    %18 = vsyncpa [#allocation4], 0
    %19 = vsyncpa [#allocation7], 0
    %20 = vsyncpa [#allocation10], 0
    %21 = vsyncpa [#allocation5], 0
    // Predicated region
    $region2: #{tpu_custom_call.1} parent=1 // pred_check
      _
    $region3: #{tpu_custom_call.1} parent=1 // pred_check_branch
      %23 = sbr.rel (0) target = $region5
    $region4: #{tpu_custom_call.1} parent=1 // pred_region
      %s25 = ssub.s32 384, 384
      %26 = vsyncadd [#allocation4], %s25
      %s27 = sshll.u32 [#allocation3], 4
      %s28 = int_to_ptr.vmem [resolvable:$true] %s27
      %33 = dma.hbm_to_vmem [thread:$0]  %s0, 384, %s28, [#allocation4], 128, 128, 8
    $region5: #{tpu_custom_call.1} parent=1 // pred_fallthru
      _
    // Predicated region
    $region6: #{tpu_custom_call.1} parent=1 // pred_check
      _
    $region7: #{tpu_custom_call.1} parent=1 // pred_check_branch
      %35 = sbr.rel (0) target = $region9
    $region8: #{tpu_custom_call.1} parent=1 // pred_region
      %s37 = ssub.s32 8192, 8192
      %38 = vsyncadd [#allocation7], %s37
      %s39 = sshll.u32 [#allocation6], 4
      %s40 = int_to_ptr.vmem [resolvable:$true] %s39
      %45 = dma.hbm_to_vmem [thread:$0]  %s1, 8192, %s40, [#allocation7], 256, 256, 16
    $region9: #{tpu_custom_call.1} parent=1 // pred_fallthru
      _
    // Predicated region
    $region10: #{tpu_custom_call.1} parent=1 // pred_check
      _
    $region11: #{tpu_custom_call.1} parent=1 // pred_check_branch
      %47 = sbr.rel (0) target = $region13
    $region12: #{tpu_custom_call.1} parent=1 // pred_region
      _
    $region13: #{tpu_custom_call.1} parent=1 // pred_fallthru
      _
    // Predicated region
    $region14: #{tpu_custom_call.1} parent=1 // pred_check
      _
    $region15: #{tpu_custom_call.1} parent=1 // pred_check_branch
      %49 = sbr.rel (0) target = $region17
    $region16: #{tpu_custom_call.1} parent=1 // pred_region
      %s51 = ssub.s32 8192, 8192
      %52 = vsyncadd [#allocation7], %s51
      %s53 = sshll.u32 [#allocation8], 4
      %s54 = int_to_ptr.vmem [resolvable:$true] %s53
      %59 = dma.hbm_to_vmem [thread:$0]  %s3, 8192, %s54, [#allocation7], 128, 128, 8
    $region17: #{tpu_custom_call.1} parent=1 // pred_fallthru
      _
    // Predicated region
    $region18: #{tpu_custom_call.1} parent=1 // pred_check
      _
    $region19: #{tpu_custom_call.1} parent=1 // pred_check_branch
      %61 = sbr.rel (0) target = $region21
    $region20: #{tpu_custom_call.1} parent=1 // pred_region
      _
    $region21: #{tpu_custom_call.1} parent=1 // pred_fallthru
      _
    // Predicated region
    $region22: #{tpu_custom_call.1} parent=1 // pred_check
      _
    $region23: #{tpu_custom_call.1} parent=1 // pred_check_branch
      %63 = sbr.rel (0) target = $region25
    $region24: #{tpu_custom_call.1} parent=1 // pred_region
      _
    $region25: #{tpu_custom_call.1} parent=1 // pred_fallthru
      _
    // Predicated region
    $region26: #{tpu_custom_call.1} parent=1 // pred_check
      _
    $region27: #{tpu_custom_call.1} parent=1 // pred_check_branch
      %65 = sbr.rel (0) target = $region29
    $region28: #{tpu_custom_call.1} parent=1 // pred_region
      _
    $region29: #{tpu_custom_call.1} parent=1 // pred_fallthru
      _
    // Predicated region
    $region30: #{tpu_custom_call.1} parent=1 // pred_check
      _
    $region31: #{tpu_custom_call.1} parent=1 // pred_check_branch
      %67 = sbr.rel (0) target = $region33
    $region32: #{tpu_custom_call.1} parent=1 // pred_region
      %s69 = ssub.s32 2048, 2048
      %70 = vsyncadd [#allocation10], %s69
      %s71 = sshll.u32 [#allocation9], 4
      %s72 = int_to_ptr.vmem [resolvable:$true] %s71
      %77 = dma.hbm_to_vmem [thread:$0]  %s7, 2048, %s72, [#allocation10], 64, 64, 4
    $region33: #{tpu_custom_call.1} parent=1 // pred_fallthru
      _
    // Predicated region
    $region34: #{tpu_custom_call.1} parent=1 // pred_check
      _
    $region35: #{tpu_custom_call.1} parent=1 // pred_check_branch
      %79 = sbr.rel (0) target = $region37
    $region36: #{tpu_custom_call.1} parent=1 // pred_region
      _
    $region37: #{tpu_custom_call.1} parent=1 // pred_fallthru
      _
    // Predicated region
    $region38: #{tpu_custom_call.1} parent=1 // pred_check
      _
    $region39: #{tpu_custom_call.1} parent=1 // pred_check_branch
      %81 = sbr.rel (0) target = $region41
    $region40: #{tpu_custom_call.1} parent=1 // pred_region
      _
    $region41: #{tpu_custom_call.1} parent=1 // pred_fallthru
      _
    // Predicated region
    $region42: #{tpu_custom_call.1} parent=1 // pred_check
      _
    $region43: #{tpu_custom_call.1} parent=1 // pred_check_branch
      %83 = sbr.rel (0) target = $region45
    $region44: #{tpu_custom_call.1} parent=1 // pred_region
      _
    $region45: #{tpu_custom_call.1} parent=1 // pred_fallthru
      _
    // Predicated region
    $region46: #{tpu_custom_call.1} parent=1 // pred_check
      _
    $region47: #{tpu_custom_call.1} parent=1 // pred_check_branch
      %85 = sbr.rel (0) target = $region49
    $region48: #{tpu_custom_call.1} parent=1 // pred_region
      %86 = dma.done [#allocation4], 384
    $region49: #{tpu_custom_call.1} parent=1 // pred_fallthru
      _
    // Predicated region
    $region50: #{tpu_custom_call.1} parent=1 // pred_check
      _
    $region51: #{tpu_custom_call.1} parent=1 // pred_check_branch
      %88 = sbr.rel (0) target = $region53
    $region52: #{tpu_custom_call.1} parent=1 // pred_region
      %89 = dma.done [#allocation7], 8192
    $region53: #{tpu_custom_call.1} parent=1 // pred_fallthru
      _
    // Predicated region
    $region54: #{tpu_custom_call.1} parent=1 // pred_check
      _
    $region55: #{tpu_custom_call.1} parent=1 // pred_check_branch
      %91 = sbr.rel (0) target = $region57
    $region56: #{tpu_custom_call.1} parent=1 // pred_region
      %92 = dma.done [#allocation7], 8192
    $region57: #{tpu_custom_call.1} parent=1 // pred_fallthru
      _
    // Predicated region
    $region58: #{tpu_custom_call.1} parent=1 // pred_check
      _
    $region59: #{tpu_custom_call.1} parent=1 // pred_check_branch
      %94 = sbr.rel (0) target = $region61
    $region60: #{tpu_custom_call.1} parent=1 // pred_region
      %95 = dma.done [#allocation10], 2048
    $region61: #{tpu_custom_call.1} parent=1 // pred_fallthru
      _
    %v97 = vld [vmem:[#allocation3] sm:$0xff]
    %v98 = vld [vmem:[#allocation3 + $0x8] sm:$0xff]
    %v99 = vld [vmem:[#allocation3 + $0x10] sm:$0xff]
    %v100 = vld [vmem:[#allocation6] sm:$0xff]
    %v101 = vld [vmem:[#allocation6 + $0x8] sm:$0xff]
    %v102 = vld [vmem:[#allocation6 + $0x10] sm:$0xff]
    %v103 = vld [vmem:[#allocation6 + $0x18] sm:$0xff]
    %v104 = vld [vmem:[#allocation6 + $0x20] sm:$0xff]
    %v105 = vld [vmem:[#allocation6 + $0x28] sm:$0xff]
    %v106 = vld [vmem:[#allocation6 + $0x30] sm:$0xff]
    %v107 = vld [vmem:[#allocation6 + $0x38] sm:$0xff]
    %v108 = vld [vmem:[#allocation6 + $0x40] sm:$0xff]
    %v109 = vld [vmem:[#allocation6 + $0x48] sm:$0xff]
    %v110 = vld [vmem:[#allocation6 + $0x50] sm:$0xff]
    %v111 = vld [vmem:[#allocation6 + $0x58] sm:$0xff]
    %v112 = vld [vmem:[#allocation6 + $0x60] sm:$0xff]
    %v113 = vld [vmem:[#allocation6 + $0x68] sm:$0xff]
    %v114 = vld [vmem:[#allocation6 + $0x70] sm:$0xff]
    %v115 = vld [vmem:[#allocation6 + $0x78] sm:$0xff]
    %v116 = vld [vmem:[#allocation6 + $0x80] sm:$0xff]
    %v117 = vld [vmem:[#allocation6 + $0x88] sm:$0xff]
    %v118 = vld [vmem:[#allocation6 + $0x90] sm:$0xff]
    %v119 = vld [vmem:[#allocation6 + $0x98] sm:$0xff]
    %v120 = vld [vmem:[#allocation6 + $0xa0] sm:$0xff]
    %v121 = vld [vmem:[#allocation6 + $0xa8] sm:$0xff]
    %v122 = vld [vmem:[#allocation6 + $0xb0] sm:$0xff]
    %v123 = vld [vmem:[#allocation6 + $0xb8] sm:$0xff]
    %v124 = vld [vmem:[#allocation6 + $0xc0] sm:$0xff]
    %v125 = vld [vmem:[#allocation6 + $0xc8] sm:$0xff]
    %v126 = vld [vmem:[#allocation6 + $0xd0] sm:$0xff]
    %v127 = vld [vmem:[#allocation6 + $0xd8] sm:$0xff]
    %v128 = vld [vmem:[#allocation6 + $0xe0] sm:$0xff]
    %v129 = vld [vmem:[#allocation6 + $0xe8] sm:$0xff]
    %v130 = vld [vmem:[#allocation6 + $0xf0] sm:$0xff]
    %v131 = vld [vmem:[#allocation6 + $0xf8] sm:$0xff]
    %v132 = vld [vmem:[#allocation6 + $0x100] sm:$0xff]
    %v133 = vld [vmem:[#allocation6 + $0x108] sm:$0xff]
    %v134 = vld [vmem:[#allocation6 + $0x110] sm:$0xff]
    %v135 = vld [vmem:[#allocation6 + $0x118] sm:$0xff]
    %v136 = vld [vmem:[#allocation6 + $0x120] sm:$0xff]
    %v137 = vld [vmem:[#allocation6 + $0x128] sm:$0xff]
    %v138 = vld [vmem:[#allocation6 + $0x130] sm:$0xff]
    %v139 = vld [vmem:[#allocation6 + $0x138] sm:$0xff]
    %v140 = vld [vmem:[#allocation6 + $0x140] sm:$0xff]
    %v141 = vld [vmem:[#allocation6 + $0x148] sm:$0xff]
    %v142 = vld [vmem:[#allocation6 + $0x150] sm:$0xff]
    %v143 = vld [vmem:[#allocation6 + $0x158] sm:$0xff]
    %v144 = vld [vmem:[#allocation6 + $0x160] sm:$0xff]
    %v145 = vld [vmem:[#allocation6 + $0x168] sm:$0xff]
    %v146 = vld [vmem:[#allocation6 + $0x170] sm:$0xff]
    %v147 = vld [vmem:[#allocation6 + $0x178] sm:$0xff]
    %v148 = vld [vmem:[#allocation6 + $0x180] sm:$0xff]
    %v149 = vld [vmem:[#allocation6 + $0x188] sm:$0xff]
    %v150 = vld [vmem:[#allocation6 + $0x190] sm:$0xff]
    %v151 = vld [vmem:[#allocation6 + $0x198] sm:$0xff]
    %v152 = vld [vmem:[#allocation6 + $0x1a0] sm:$0xff]
    %v153 = vld [vmem:[#allocation6 + $0x1a8] sm:$0xff]
    %v154 = vld [vmem:[#allocation6 + $0x1b0] sm:$0xff]
    %v155 = vld [vmem:[#allocation6 + $0x1b8] sm:$0xff]
    %v156 = vld [vmem:[#allocation6 + $0x1c0] sm:$0xff]
    %v157 = vld [vmem:[#allocation6 + $0x1c8] sm:$0xff]
    %v158 = vld [vmem:[#allocation6 + $0x1d0] sm:$0xff]
    %v159 = vld [vmem:[#allocation6 + $0x1d8] sm:$0xff]
    %v160 = vld [vmem:[#allocation6 + $0x1e0] sm:$0xff]
    %v161 = vld [vmem:[#allocation6 + $0x1e8] sm:$0xff]
    %v162 = vld [vmem:[#allocation6 + $0x1f0] sm:$0xff]
    %v163 = vld [vmem:[#allocation6 + $0x1f8] sm:$0xff]
    %v164 = vld [vmem:[%s2] sm:$0xf]
    %v166 = vlaneseq
    %v167 = vshrl.u32 %v166, 7
    %v168 = vsub.s32 0, %v167
    %v169 = vrot.slane %v164, %v168
    %v170 = vlaneseq
    %v171 = vshrl.u32 %v170, 7
    %v172 = vsub.s32 1, %v171
    %v173 = vrot.slane %v164, %v172
    %v174 = vlaneseq
    %v175 = vshrl.u32 %v174, 7
    %v176 = vsub.s32 2, %v175
    %v177 = vrot.slane %v164, %v176
    %v178 = vlaneseq
    %v179 = vshrl.u32 %v178, 7
    %v180 = vsub.s32 3, %v179
    %v181 = vrot.slane %v164, %v180
    %v189 = vunpack.c.l.b16 %v97
    %v190 = vunpack.c.h.b16 %v97
    %v191 = vunpack.c.l.b16 %v98
    %v192 = vunpack.c.h.b16 %v98
    %v193 = vunpack.c.l.b16 %v99
    %v194 = vunpack.c.h.b16 %v99
    %v195 = vpack.c.b16 %v191, %v189
    %v196 = vpack.c.b16 %v192, %v190
    %v197 = vpack.c.b16 %v193, %v193
    %v198 = vpack.c.b16 %v194, %v194
    %v267 = vunpack.c.l.b16 %v100
    %v268 = vunpack.c.h.b16 %v100
    %v269 = vunpack.c.l.b16 %v101
    %v270 = vunpack.c.h.b16 %v101
    %v271 = vunpack.c.l.b16 %v102
    %v272 = vunpack.c.h.b16 %v102
    %v273 = vunpack.c.l.b16 %v103
    %v274 = vunpack.c.h.b16 %v103
    %v275 = vunpack.c.l.b16 %v104
    %v276 = vunpack.c.h.b16 %v104
    %v277 = vunpack.c.l.b16 %v105
    %v278 = vunpack.c.h.b16 %v105
    %v279 = vunpack.c.l.b16 %v106
    %v280 = vunpack.c.h.b16 %v106
    %v281 = vunpack.c.l.b16 %v107
    %v282 = vunpack.c.h.b16 %v107
    %v283 = vunpack.c.l.b16 %v108
    %v284 = vunpack.c.h.b16 %v108
    %v285 = vunpack.c.l.b16 %v109
    %v286 = vunpack.c.h.b16 %v109
    %v287 = vunpack.c.l.b16 %v110
    %v288 = vunpack.c.h.b16 %v110
    %v289 = vunpack.c.l.b16 %v111
    %v290 = vunpack.c.h.b16 %v111
    %v291 = vunpack.c.l.b16 %v112
    %v292 = vunpack.c.h.b16 %v112
    %v293 = vunpack.c.l.b16 %v113
    %v294 = vunpack.c.h.b16 %v113
    %v295 = vunpack.c.l.b16 %v114
    %v296 = vunpack.c.h.b16 %v114
    %v297 = vunpack.c.l.b16 %v115
    %v298 = vunpack.c.h.b16 %v115
    %v299 = vunpack.c.l.b16 %v116
    %v300 = vunpack.c.h.b16 %v116
    %v301 = vunpack.c.l.b16 %v117
    %v302 = vunpack.c.h.b16 %v117
    %v303 = vunpack.c.l.b16 %v118
    %v304 = vunpack.c.h.b16 %v118
    %v305 = vunpack.c.l.b16 %v119
    %v306 = vunpack.c.h.b16 %v119
    %v307 = vunpack.c.l.b16 %v120
    %v308 = vunpack.c.h.b16 %v120
    %v309 = vunpack.c.l.b16 %v121
    %v310 = vunpack.c.h.b16 %v121
    %v311 = vunpack.c.l.b16 %v122
    %v312 = vunpack.c.h.b16 %v122
    %v313 = vunpack.c.l.b16 %v123
    %v314 = vunpack.c.h.b16 %v123
    %v315 = vunpack.c.l.b16 %v124
    %v316 = vunpack.c.h.b16 %v124
    %v317 = vunpack.c.l.b16 %v125
    %v318 = vunpack.c.h.b16 %v125
    %v319 = vunpack.c.l.b16 %v126
    %v320 = vunpack.c.h.b16 %v126
    %v321 = vunpack.c.l.b16 %v127
    %v322 = vunpack.c.h.b16 %v127
    %v323 = vunpack.c.l.b16 %v128
    %v324 = vunpack.c.h.b16 %v128
    %v325 = vunpack.c.l.b16 %v129
    %v326 = vunpack.c.h.b16 %v129
    %v327 = vunpack.c.l.b16 %v130
    %v328 = vunpack.c.h.b16 %v130
    %v329 = vunpack.c.l.b16 %v131
    %v330 = vunpack.c.h.b16 %v131
    %v331 = vunpack.c.l.b16 %v132
    %v332 = vunpack.c.h.b16 %v132
    %v333 = vunpack.c.l.b16 %v133
    %v334 = vunpack.c.h.b16 %v133
    %v335 = vunpack.c.l.b16 %v134
    %v336 = vunpack.c.h.b16 %v134
    %v337 = vunpack.c.l.b16 %v135
    %v338 = vunpack.c.h.b16 %v135
    %v339 = vunpack.c.l.b16 %v136
    %v340 = vunpack.c.h.b16 %v136
    %v341 = vunpack.c.l.b16 %v137
    %v342 = vunpack.c.h.b16 %v137
    %v343 = vunpack.c.l.b16 %v138
    %v344 = vunpack.c.h.b16 %v138
    %v345 = vunpack.c.l.b16 %v139
    %v346 = vunpack.c.h.b16 %v139
    %v347 = vunpack.c.l.b16 %v140
    %v348 = vunpack.c.h.b16 %v140
    %v349 = vunpack.c.l.b16 %v141
    %v350 = vunpack.c.h.b16 %v141
    %v351 = vunpack.c.l.b16 %v142
    %v352 = vunpack.c.h.b16 %v142
    %v353 = vunpack.c.l.b16 %v143
    %v354 = vunpack.c.h.b16 %v143
    %v355 = vunpack.c.l.b16 %v144
    %v356 = vunpack.c.h.b16 %v144
    %v357 = vunpack.c.l.b16 %v145
    %v358 = vunpack.c.h.b16 %v145
    %v359 = vunpack.c.l.b16 %v146
    %v360 = vunpack.c.h.b16 %v146
    %v361 = vunpack.c.l.b16 %v147
    %v362 = vunpack.c.h.b16 %v147
    %v363 = vunpack.c.l.b16 %v148
    %v364 = vunpack.c.h.b16 %v148
    %v365 = vunpack.c.l.b16 %v149
    %v366 = vunpack.c.h.b16 %v149
    %v367 = vunpack.c.l.b16 %v150
    %v368 = vunpack.c.h.b16 %v150
    %v369 = vunpack.c.l.b16 %v151
    %v370 = vunpack.c.h.b16 %v151
    %v371 = vunpack.c.l.b16 %v152
    %v372 = vunpack.c.h.b16 %v152
    %v373 = vunpack.c.l.b16 %v153
    %v374 = vunpack.c.h.b16 %v153
    %v375 = vunpack.c.l.b16 %v154
    %v376 = vunpack.c.h.b16 %v154
    %v377 = vunpack.c.l.b16 %v155
    %v378 = vunpack.c.h.b16 %v155
    %v379 = vunpack.c.l.b16 %v156
    %v380 = vunpack.c.h.b16 %v156
    %v381 = vunpack.c.l.b16 %v157
    %v382 = vunpack.c.h.b16 %v157
    %v383 = vunpack.c.l.b16 %v158
    %v384 = vunpack.c.h.b16 %v158
    %v385 = vunpack.c.l.b16 %v159
    %v386 = vunpack.c.h.b16 %v159
    %v387 = vunpack.c.l.b16 %v160
    %v388 = vunpack.c.h.b16 %v160
    %v389 = vunpack.c.l.b16 %v161
    %v390 = vunpack.c.h.b16 %v161
    %v391 = vunpack.c.l.b16 %v162
    %v392 = vunpack.c.h.b16 %v162
    %v393 = vunpack.c.l.b16 %v163
    %v394 = vunpack.c.h.b16 %v163
    %v395 = vpack.c.b16 %v271, %v267
    %v396 = vpack.c.b16 %v272, %v268
    %v397 = vpack.c.b16 %v273, %v269
    %v398 = vpack.c.b16 %v274, %v270
    %v399 = vpack.c.b16 %v279, %v275
    %v400 = vpack.c.b16 %v280, %v276
    %v401 = vpack.c.b16 %v281, %v277
    %v402 = vpack.c.b16 %v282, %v278
    %v403 = vpack.c.b16 %v287, %v283
    %v404 = vpack.c.b16 %v288, %v284
    %v405 = vpack.c.b16 %v289, %v285
    %v406 = vpack.c.b16 %v290, %v286
    %v407 = vpack.c.b16 %v295, %v291
    %v408 = vpack.c.b16 %v296, %v292
    %v409 = vpack.c.b16 %v297, %v293
    %v410 = vpack.c.b16 %v298, %v294
    %v411 = vpack.c.b16 %v303, %v299
    %v412 = vpack.c.b16 %v304, %v300
    %v413 = vpack.c.b16 %v305, %v301
    %v414 = vpack.c.b16 %v306, %v302
    %v415 = vpack.c.b16 %v311, %v307
    %v416 = vpack.c.b16 %v312, %v308
    %v417 = vpack.c.b16 %v313, %v309
    %v418 = vpack.c.b16 %v314, %v310
    %v419 = vpack.c.b16 %v319, %v315
    %v420 = vpack.c.b16 %v320, %v316
    %v421 = vpack.c.b16 %v321, %v317
    %v422 = vpack.c.b16 %v322, %v318
    %v423 = vpack.c.b16 %v327, %v323
    %v424 = vpack.c.b16 %v328, %v324
    %v425 = vpack.c.b16 %v329, %v325
    %v426 = vpack.c.b16 %v330, %v326
    %v427 = vpack.c.b16 %v335, %v331
    %v428 = vpack.c.b16 %v336, %v332
    %v429 = vpack.c.b16 %v337, %v333
    %v430 = vpack.c.b16 %v338, %v334
    %v431 = vpack.c.b16 %v343, %v339
    %v432 = vpack.c.b16 %v344, %v340
    %v433 = vpack.c.b16 %v345, %v341
    %v434 = vpack.c.b16 %v346, %v342
    %v435 = vpack.c.b16 %v351, %v347
    %v436 = vpack.c.b16 %v352, %v348
    %v437 = vpack.c.b16 %v353, %v349
    %v438 = vpack.c.b16 %v354, %v350
    %v439 = vpack.c.b16 %v359, %v355
    %v440 = vpack.c.b16 %v360, %v356
    %v441 = vpack.c.b16 %v361, %v357
    %v442 = vpack.c.b16 %v362, %v358
    %v443 = vpack.c.b16 %v367, %v363
    %v444 = vpack.c.b16 %v368, %v364
    %v445 = vpack.c.b16 %v369, %v365
    %v446 = vpack.c.b16 %v370, %v366
    %v447 = vpack.c.b16 %v375, %v371
    %v448 = vpack.c.b16 %v376, %v372
    %v449 = vpack.c.b16 %v377, %v373
    %v450 = vpack.c.b16 %v378, %v374
    %v451 = vpack.c.b16 %v383, %v379
    %v452 = vpack.c.b16 %v384, %v380
    %v453 = vpack.c.b16 %v385, %v381
    %v454 = vpack.c.b16 %v386, %v382
    %v455 = vpack.c.b16 %v391, %v387
    %v456 = vpack.c.b16 %v392, %v388
    %v457 = vpack.c.b16 %v393, %v389
    %v458 = vpack.c.b16 %v394, %v390
    %523 = vmatprep.subr.bf16.mxu0 %v424
    %524 = vmatpush1.bf16.msra.mxu0 %v423
    %525 = vmatprep.subr.bf16.mxu0 %v420
    %526 = vmatpush1.bf16.msra.mxu0 %v419
    %527 = vmatprep.subr.bf16.mxu0 %v416
    %528 = vmatpush1.bf16.msra.mxu0 %v415
    %529 = vmatprep.subr.bf16.mxu0 %v412
    %530 = vmatpush1.bf16.msra.mxu0 %v411
    %531 = vmatprep.subr.bf16.mxu0 %v408
    %532 = vmatpush1.bf16.msra.mxu0 %v407
    %533 = vmatprep.subr.bf16.mxu0 %v404
    %534 = vmatpush1.bf16.msra.mxu0 %v403
    %535 = vmatprep.subr.bf16.mxu0 %v400
    %536 = vmatpush1.bf16.msra.mxu0 %v399
    %537 = vmatprep.subr.bf16.mxu0 %v396
    %538 = vmatpush1.bf16.msra.mxu0 %v395
    %539 = vmatprep.subr.bf16.mxu0 %v456
    %540 = vmatpush2.bf16.msra.mxu0 %v455
    %541 = vmatprep.subr.bf16.mxu0 %v452
    %542 = vmatpush2.bf16.msra.mxu0 %v451
    %543 = vmatprep.subr.bf16.mxu0 %v448
    %544 = vmatpush2.bf16.msra.mxu0 %v447
    %545 = vmatprep.subr.bf16.mxu0 %v444
    %546 = vmatpush2.bf16.msra.mxu0 %v443
    %547 = vmatprep.subr.bf16.mxu0 %v440
    %548 = vmatpush2.bf16.msra.mxu0 %v439
    %549 = vmatprep.subr.bf16.mxu0 %v436
    %550 = vmatpush2.bf16.msra.mxu0 %v435
    %551 = vmatprep.subr.bf16.mxu0 %v432
    %552 = vmatpush2.bf16.msra.mxu0 %v431
    %553 = vmatprep.subr.bf16.mxu0 %v428
    %554 = vmatpush2.bf16.msra.mxu0 %v427
    %555 = vmatprep.mubr.bf16.mxu0 %v196
    %556 = vmatmul.mubr.bf16.gmra.mxu0 %v195
    %v557 = vpop.f32.mrf.mxu0
    %v558 = vadd.f32 %v169, %v557
    %v559 = vpop.f32.mrf.mxu0
    %v560 = vadd.f32 %v173, %v559
    %v561 = vpop.f32.mrf.mxu0
    %v562 = vadd.f32 %v169, %v561
    %v563 = vpop.f32.mrf.mxu0
    %v564 = vadd.f32 %v173, %v563
    %565 = vmatprep.mubr.bf16.mxu0 %v198
    %566 = vmatmul.mubr.bf16.gmra.mxu0 %v197
    %v567 = vpop.f32.mrf.mxu0
    %v568 = vadd.f32 %v169, %v567
    %v569 = vpop.f32.mrf.mxu0
    %v570 = vadd.f32 %v173, %v569
    %v571 = vpop.f32.mrf.mxu0
    %v572 = vpop.f32.mrf.mxu0
    %573 = vdwg.mxu0
    %574 = vmatprep.subr.bf16.mxu0 %v426
    %575 = vmatpush1.bf16.msra.mxu0 %v425
    %576 = vmatprep.subr.bf16.mxu0 %v422
    %577 = vmatpush1.bf16.msra.mxu0 %v421
    %578 = vmatprep.subr.bf16.mxu0 %v418
    %579 = vmatpush1.bf16.msra.mxu0 %v417
    %580 = vmatprep.subr.bf16.mxu0 %v414
    %581 = vmatpush1.bf16.msra.mxu0 %v413
    %582 = vmatprep.subr.bf16.mxu0 %v410
    %583 = vmatpush1.bf16.msra.mxu0 %v409
    %584 = vmatprep.subr.bf16.mxu0 %v406
    %585 = vmatpush1.bf16.msra.mxu0 %v405
    %586 = vmatprep.subr.bf16.mxu0 %v402
    %587 = vmatpush1.bf16.msra.mxu0 %v401
    %588 = vmatprep.subr.bf16.mxu0 %v398
    %589 = vmatpush1.bf16.msra.mxu0 %v397
    %590 = vmatprep.subr.bf16.mxu0 %v458
    %591 = vmatpush2.bf16.msra.mxu0 %v457
    %592 = vmatprep.subr.bf16.mxu0 %v454
    %593 = vmatpush2.bf16.msra.mxu0 %v453
    %594 = vmatprep.subr.bf16.mxu0 %v450
    %595 = vmatpush2.bf16.msra.mxu0 %v449
    %596 = vmatprep.subr.bf16.mxu0 %v446
    %597 = vmatpush2.bf16.msra.mxu0 %v445
    %598 = vmatprep.subr.bf16.mxu0 %v442
    %599 = vmatpush2.bf16.msra.mxu0 %v441
    %600 = vmatprep.subr.bf16.mxu0 %v438
    %601 = vmatpush2.bf16.msra.mxu0 %v437
    %602 = vmatprep.subr.bf16.mxu0 %v434
    %603 = vmatpush2.bf16.msra.mxu0 %v433
    %604 = vmatprep.subr.bf16.mxu0 %v430
    %605 = vmatpush2.bf16.msra.mxu0 %v429
    %606 = vmatprep.mubr.bf16.mxu0 %v196
    %607 = vmatmul.mubr.bf16.gmra.mxu0 %v195
    %v608 = vpop.f32.mrf.mxu0
    %v609 = vadd.f32 %v177, %v608
    %v610 = vpop.f32.mrf.mxu0
    %v611 = vadd.f32 %v181, %v610
    %v612 = vpop.f32.mrf.mxu0
    %v613 = vadd.f32 %v177, %v612
    %v614 = vpop.f32.mrf.mxu0
    %v615 = vadd.f32 %v181, %v614
    %616 = vmatprep.mubr.bf16.mxu0 %v198
    %617 = vmatmul.mubr.bf16.gmra.mxu0 %v197
    %v618 = vpop.f32.mrf.mxu0
    %v619 = vadd.f32 %v177, %v618
    %v620 = vpop.f32.mrf.mxu0
    %v621 = vadd.f32 %v181, %v620
    %v622 = vpop.f32.mrf.mxu0
    %v623 = vpop.f32.mrf.mxu0
    %624 = vdwg.mxu0
    %v625 = vmax.f32 %v558, 0.0
    %v626 = vmax.f32 %v560, 0.0
    %v627 = vmax.f32 %v609, 0.0
    %v628 = vmax.f32 %v611, 0.0
    %v629 = vmax.f32 %v562, 0.0
    %v630 = vmax.f32 %v564, 0.0
    %v631 = vmax.f32 %v613, 0.0
    %v632 = vmax.f32 %v615, 0.0
    %v633 = vmax.f32 %v568, 0.0
    %v634 = vmax.f32 %v570, 0.0
    %v635 = vmax.f32 %v619, 0.0
    %v636 = vmax.f32 %v621, 0.0
    %v637 = vpack.c.bf16 %v629, %v625
    %v638 = vpack.c.bf16 %v630, %v626
    %v639 = vpack.c.bf16 %v631, %v627
    %v640 = vpack.c.bf16 %v632, %v628
    %v641 = vpack.c.bf16 %v633, %v633
    %v642 = vpack.c.bf16 %v634, %v634
    %v643 = vpack.c.bf16 %v635, %v635
    %v644 = vpack.c.bf16 %v636, %v636
    %v645 = vld [vmem:[#allocation8] sm:$0xff]
    %v646 = vld [vmem:[#allocation8 + $0x8] sm:$0xff]
    %v647 = vld [vmem:[#allocation8 + $0x10] sm:$0xff]
    %v648 = vld [vmem:[#allocation8 + $0x18] sm:$0xff]
    %v649 = vld [vmem:[#allocation8 + $0x20] sm:$0xff]
    %v650 = vld [vmem:[#allocation8 + $0x28] sm:$0xff]
    %v651 = vld [vmem:[#allocation8 + $0x30] sm:$0xff]
    %v652 = vld [vmem:[#allocation8 + $0x38] sm:$0xff]
    %v653 = vld [vmem:[#allocation8 + $0x40] sm:$0xff]
    %v654 = vld [vmem:[#allocation8 + $0x48] sm:$0xff]
    %v655 = vld [vmem:[#allocation8 + $0x50] sm:$0xff]
    %v656 = vld [vmem:[#allocation8 + $0x58] sm:$0xff]
    %v657 = vld [vmem:[#allocation8 + $0x60] sm:$0xff]
    %v658 = vld [vmem:[#allocation8 + $0x68] sm:$0xff]
    %v659 = vld [vmem:[#allocation8 + $0x70] sm:$0xff]
    %v660 = vld [vmem:[#allocation8 + $0x78] sm:$0xff]
    %v661 = vld [vmem:[#allocation8 + $0x80] sm:$0xff]
    %v662 = vld [vmem:[#allocation8 + $0x88] sm:$0xff]
    %v663 = vld [vmem:[#allocation8 + $0x90] sm:$0xff]
    %v664 = vld [vmem:[#allocation8 + $0x98] sm:$0xff]
    %v665 = vld [vmem:[#allocation8 + $0xa0] sm:$0xff]
    %v666 = vld [vmem:[#allocation8 + $0xa8] sm:$0xff]
    %v667 = vld [vmem:[#allocation8 + $0xb0] sm:$0xff]
    %v668 = vld [vmem:[#allocation8 + $0xb8] sm:$0xff]
    %v669 = vld [vmem:[#allocation8 + $0xc0] sm:$0xff]
    %v670 = vld [vmem:[#allocation8 + $0xc8] sm:$0xff]
    %v671 = vld [vmem:[#allocation8 + $0xd0] sm:$0xff]
    %v672 = vld [vmem:[#allocation8 + $0xd8] sm:$0xff]
    %v673 = vld [vmem:[#allocation8 + $0xe0] sm:$0xff]
    %v674 = vld [vmem:[#allocation8 + $0xe8] sm:$0xff]
    %v675 = vld [vmem:[#allocation8 + $0xf0] sm:$0xff]
    %v676 = vld [vmem:[#allocation8 + $0xf8] sm:$0xff]
    %v677 = vld [vmem:[#allocation8 + $0x100] sm:$0xff]
    %v678 = vld [vmem:[#allocation8 + $0x108] sm:$0xff]
    %v679 = vld [vmem:[#allocation8 + $0x110] sm:$0xff]
    %v680 = vld [vmem:[#allocation8 + $0x118] sm:$0xff]
    %v681 = vld [vmem:[#allocation8 + $0x120] sm:$0xff]
    %v682 = vld [vmem:[#allocation8 + $0x128] sm:$0xff]
    %v683 = vld [vmem:[#allocation8 + $0x130] sm:$0xff]
    %v684 = vld [vmem:[#allocation8 + $0x138] sm:$0xff]
    %v685 = vld [vmem:[#allocation8 + $0x140] sm:$0xff]
    %v686 = vld [vmem:[#allocation8 + $0x148] sm:$0xff]
    %v687 = vld [vmem:[#allocation8 + $0x150] sm:$0xff]
    %v688 = vld [vmem:[#allocation8 + $0x158] sm:$0xff]
    %v689 = vld [vmem:[#allocation8 + $0x160] sm:$0xff]
    %v690 = vld [vmem:[#allocation8 + $0x168] sm:$0xff]
    %v691 = vld [vmem:[#allocation8 + $0x170] sm:$0xff]
    %v692 = vld [vmem:[#allocation8 + $0x178] sm:$0xff]
    %v693 = vld [vmem:[#allocation8 + $0x180] sm:$0xff]
    %v694 = vld [vmem:[#allocation8 + $0x188] sm:$0xff]
    %v695 = vld [vmem:[#allocation8 + $0x190] sm:$0xff]
    %v696 = vld [vmem:[#allocation8 + $0x198] sm:$0xff]
    %v697 = vld [vmem:[#allocation8 + $0x1a0] sm:$0xff]
    %v698 = vld [vmem:[#allocation8 + $0x1a8] sm:$0xff]
    %v699 = vld [vmem:[#allocation8 + $0x1b0] sm:$0xff]
    %v700 = vld [vmem:[#allocation8 + $0x1b8] sm:$0xff]
    %v701 = vld [vmem:[#allocation8 + $0x1c0] sm:$0xff]
    %v702 = vld [vmem:[#allocation8 + $0x1c8] sm:$0xff]
    %v703 = vld [vmem:[#allocation8 + $0x1d0] sm:$0xff]
    %v704 = vld [vmem:[#allocation8 + $0x1d8] sm:$0xff]
    %v705 = vld [vmem:[#allocation8 + $0x1e0] sm:$0xff]
    %v706 = vld [vmem:[#allocation8 + $0x1e8] sm:$0xff]
    %v707 = vld [vmem:[#allocation8 + $0x1f0] sm:$0xff]
    %v708 = vld [vmem:[#allocation8 + $0x1f8] sm:$0xff]
    %v709 = vld [vmem:[%s4] sm:$0x3]
    %v711 = vlaneseq
    %v712 = vshrl.u32 %v711, 7
    %v713 = vsub.s32 0, %v712
    %v714 = vrot.slane %v709, %v713
    %v715 = vlaneseq
    %v716 = vshrl.u32 %v715, 7
    %v717 = vsub.s32 1, %v716
    %v718 = vrot.slane %v709, %v717
    %v785 = vunpack.c.l.b16 %v645
    %v786 = vunpack.c.h.b16 %v645
    %v787 = vunpack.c.l.b16 %v646
    %v788 = vunpack.c.h.b16 %v646
    %v789 = vunpack.c.l.b16 %v647
    %v790 = vunpack.c.h.b16 %v647
    %v791 = vunpack.c.l.b16 %v648
    %v792 = vunpack.c.h.b16 %v648
    %v793 = vunpack.c.l.b16 %v649
    %v794 = vunpack.c.h.b16 %v649
    %v795 = vunpack.c.l.b16 %v650
    %v796 = vunpack.c.h.b16 %v650
    %v797 = vunpack.c.l.b16 %v651
    %v798 = vunpack.c.h.b16 %v651
    %v799 = vunpack.c.l.b16 %v652
    %v800 = vunpack.c.h.b16 %v652
    %v801 = vunpack.c.l.b16 %v653
    %v802 = vunpack.c.h.b16 %v653
    %v803 = vunpack.c.l.b16 %v654
    %v804 = vunpack.c.h.b16 %v654
    %v805 = vunpack.c.l.b16 %v655
    %v806 = vunpack.c.h.b16 %v655
    %v807 = vunpack.c.l.b16 %v656
    %v808 = vunpack.c.h.b16 %v656
    %v809 = vunpack.c.l.b16 %v657
    %v810 = vunpack.c.h.b16 %v657
    %v811 = vunpack.c.l.b16 %v658
    %v812 = vunpack.c.h.b16 %v658
    %v813 = vunpack.c.l.b16 %v659
    %v814 = vunpack.c.h.b16 %v659
    %v815 = vunpack.c.l.b16 %v660
    %v816 = vunpack.c.h.b16 %v660
    %v817 = vunpack.c.l.b16 %v661
    %v818 = vunpack.c.h.b16 %v661
    %v819 = vunpack.c.l.b16 %v662
    %v820 = vunpack.c.h.b16 %v662
    %v821 = vunpack.c.l.b16 %v663
    %v822 = vunpack.c.h.b16 %v663
    %v823 = vunpack.c.l.b16 %v664
    %v824 = vunpack.c.h.b16 %v664
    %v825 = vunpack.c.l.b16 %v665
    %v826 = vunpack.c.h.b16 %v665
    %v827 = vunpack.c.l.b16 %v666
    %v828 = vunpack.c.h.b16 %v666
    %v829 = vunpack.c.l.b16 %v667
    %v830 = vunpack.c.h.b16 %v667
    %v831 = vunpack.c.l.b16 %v668
    %v832 = vunpack.c.h.b16 %v668
    %v833 = vunpack.c.l.b16 %v669
    %v834 = vunpack.c.h.b16 %v669
    %v835 = vunpack.c.l.b16 %v670
    %v836 = vunpack.c.h.b16 %v670
    %v837 = vunpack.c.l.b16 %v671
    %v838 = vunpack.c.h.b16 %v671
    %v839 = vunpack.c.l.b16 %v672
    %v840 = vunpack.c.h.b16 %v672
    %v841 = vunpack.c.l.b16 %v673
    %v842 = vunpack.c.h.b16 %v673
    %v843 = vunpack.c.l.b16 %v674
    %v844 = vunpack.c.h.b16 %v674
    %v845 = vunpack.c.l.b16 %v675
    %v846 = vunpack.c.h.b16 %v675
    %v847 = vunpack.c.l.b16 %v676
    %v848 = vunpack.c.h.b16 %v676
    %v849 = vunpack.c.l.b16 %v677
    %v850 = vunpack.c.h.b16 %v677
    %v851 = vunpack.c.l.b16 %v678
    %v852 = vunpack.c.h.b16 %v678
    %v853 = vunpack.c.l.b16 %v679
    %v854 = vunpack.c.h.b16 %v679
    %v855 = vunpack.c.l.b16 %v680
    %v856 = vunpack.c.h.b16 %v680
    %v857 = vunpack.c.l.b16 %v681
    %v858 = vunpack.c.h.b16 %v681
    %v859 = vunpack.c.l.b16 %v682
    %v860 = vunpack.c.h.b16 %v682
    %v861 = vunpack.c.l.b16 %v683
    %v862 = vunpack.c.h.b16 %v683
    %v863 = vunpack.c.l.b16 %v684
    %v864 = vunpack.c.h.b16 %v684
    %v865 = vunpack.c.l.b16 %v685
    %v866 = vunpack.c.h.b16 %v685
    %v867 = vunpack.c.l.b16 %v686
    %v868 = vunpack.c.h.b16 %v686
    %v869 = vunpack.c.l.b16 %v687
    %v870 = vunpack.c.h.b16 %v687
    %v871 = vunpack.c.l.b16 %v688
    %v872 = vunpack.c.h.b16 %v688
    %v873 = vunpack.c.l.b16 %v689
    %v874 = vunpack.c.h.b16 %v689
    %v875 = vunpack.c.l.b16 %v690
    %v876 = vunpack.c.h.b16 %v690
    %v877 = vunpack.c.l.b16 %v691
    %v878 = vunpack.c.h.b16 %v691
    %v879 = vunpack.c.l.b16 %v692
    %v880 = vunpack.c.h.b16 %v692
    %v881 = vunpack.c.l.b16 %v693
    %v882 = vunpack.c.h.b16 %v693
    %v883 = vunpack.c.l.b16 %v694
    %v884 = vunpack.c.h.b16 %v694
    %v885 = vunpack.c.l.b16 %v695
    %v886 = vunpack.c.h.b16 %v695
    %v887 = vunpack.c.l.b16 %v696
    %v888 = vunpack.c.h.b16 %v696
    %v889 = vunpack.c.l.b16 %v697
    %v890 = vunpack.c.h.b16 %v697
    %v891 = vunpack.c.l.b16 %v698
    %v892 = vunpack.c.h.b16 %v698
    %v893 = vunpack.c.l.b16 %v699
    %v894 = vunpack.c.h.b16 %v699
    %v895 = vunpack.c.l.b16 %v700
    %v896 = vunpack.c.h.b16 %v700
    %v897 = vunpack.c.l.b16 %v701
    %v898 = vunpack.c.h.b16 %v701
    %v899 = vunpack.c.l.b16 %v702
    %v900 = vunpack.c.h.b16 %v702
    %v901 = vunpack.c.l.b16 %v703
    %v902 = vunpack.c.h.b16 %v703
    %v903 = vunpack.c.l.b16 %v704
    %v904 = vunpack.c.h.b16 %v704
    %v905 = vunpack.c.l.b16 %v705
    %v906 = vunpack.c.h.b16 %v705
    %v907 = vunpack.c.l.b16 %v706
    %v908 = vunpack.c.h.b16 %v706
    %v909 = vunpack.c.l.b16 %v707
    %v910 = vunpack.c.h.b16 %v707
    %v911 = vunpack.c.l.b16 %v708
    %v912 = vunpack.c.h.b16 %v708
    %v913 = vpack.c.b16 %v787, %v785
    %v914 = vpack.c.b16 %v788, %v786
    %v915 = vpack.c.b16 %v791, %v789
    %v916 = vpack.c.b16 %v792, %v790
    %v917 = vpack.c.b16 %v795, %v793
    %v918 = vpack.c.b16 %v796, %v794
    %v919 = vpack.c.b16 %v799, %v797
    %v920 = vpack.c.b16 %v800, %v798
    %v921 = vpack.c.b16 %v803, %v801
    %v922 = vpack.c.b16 %v804, %v802
    %v923 = vpack.c.b16 %v807, %v805
    %v924 = vpack.c.b16 %v808, %v806
    %v925 = vpack.c.b16 %v811, %v809
    %v926 = vpack.c.b16 %v812, %v810
    %v927 = vpack.c.b16 %v815, %v813
    %v928 = vpack.c.b16 %v816, %v814
    %v929 = vpack.c.b16 %v819, %v817
    %v930 = vpack.c.b16 %v820, %v818
    %v931 = vpack.c.b16 %v823, %v821
    %v932 = vpack.c.b16 %v824, %v822
    %v933 = vpack.c.b16 %v827, %v825
    %v934 = vpack.c.b16 %v828, %v826
    %v935 = vpack.c.b16 %v831, %v829
    %v936 = vpack.c.b16 %v832, %v830
    %v937 = vpack.c.b16 %v835, %v833
    %v938 = vpack.c.b16 %v836, %v834
    %v939 = vpack.c.b16 %v839, %v837
    %v940 = vpack.c.b16 %v840, %v838
    %v941 = vpack.c.b16 %v843, %v841
    %v942 = vpack.c.b16 %v844, %v842
    %v943 = vpack.c.b16 %v847, %v845
    %v944 = vpack.c.b16 %v848, %v846
    %v945 = vpack.c.b16 %v851, %v849
    %v946 = vpack.c.b16 %v852, %v850
    %v947 = vpack.c.b16 %v855, %v853
    %v948 = vpack.c.b16 %v856, %v854
    %v949 = vpack.c.b16 %v859, %v857
    %v950 = vpack.c.b16 %v860, %v858
    %v951 = vpack.c.b16 %v863, %v861
    %v952 = vpack.c.b16 %v864, %v862
    %v953 = vpack.c.b16 %v867, %v865
    %v954 = vpack.c.b16 %v868, %v866
    %v955 = vpack.c.b16 %v871, %v869
    %v956 = vpack.c.b16 %v872, %v870
    %v957 = vpack.c.b16 %v875, %v873
    %v958 = vpack.c.b16 %v876, %v874
    %v959 = vpack.c.b16 %v879, %v877
    %v960 = vpack.c.b16 %v880, %v878
    %v961 = vpack.c.b16 %v883, %v881
    %v962 = vpack.c.b16 %v884, %v882
    %v963 = vpack.c.b16 %v887, %v885
    %v964 = vpack.c.b16 %v888, %v886
    %v965 = vpack.c.b16 %v891, %v889
    %v966 = vpack.c.b16 %v892, %v890
    %v967 = vpack.c.b16 %v895, %v893
    %v968 = vpack.c.b16 %v896, %v894
    %v969 = vpack.c.b16 %v899, %v897
    %v970 = vpack.c.b16 %v900, %v898
    %v971 = vpack.c.b16 %v903, %v901
    %v972 = vpack.c.b16 %v904, %v902
    %v973 = vpack.c.b16 %v907, %v905
    %v974 = vpack.c.b16 %v908, %v906
    %v975 = vpack.c.b16 %v911, %v909
    %v976 = vpack.c.b16 %v912, %v910
    %1041 = vmatprep.subr.bf16.mxu0 %v928
    %1042 = vmatpush1.bf16.msra.mxu0 %v927
    %1043 = vmatprep.subr.bf16.mxu0 %v926
    %1044 = vmatpush1.bf16.msra.mxu0 %v925
    %1045 = vmatprep.subr.bf16.mxu0 %v924
    %1046 = vmatpush1.bf16.msra.mxu0 %v923
    %1047 = vmatprep.subr.bf16.mxu0 %v922
    %1048 = vmatpush1.bf16.msra.mxu0 %v921
    %1049 = vmatprep.subr.bf16.mxu0 %v920
    %1050 = vmatpush1.bf16.msra.mxu0 %v919
    %1051 = vmatprep.subr.bf16.mxu0 %v918
    %1052 = vmatpush1.bf16.msra.mxu0 %v917
    %1053 = vmatprep.subr.bf16.mxu0 %v916
    %1054 = vmatpush1.bf16.msra.mxu0 %v915
    %1055 = vmatprep.subr.bf16.mxu0 %v914
    %1056 = vmatpush1.bf16.msra.mxu0 %v913
    %1057 = vmatprep.subr.bf16.mxu0 %v944
    %1058 = vmatpush2.bf16.msra.mxu0 %v943
    %1059 = vmatprep.subr.bf16.mxu0 %v942
    %1060 = vmatpush2.bf16.msra.mxu0 %v941
    %1061 = vmatprep.subr.bf16.mxu0 %v940
    %1062 = vmatpush2.bf16.msra.mxu0 %v939
    %1063 = vmatprep.subr.bf16.mxu0 %v938
    %1064 = vmatpush2.bf16.msra.mxu0 %v937
    %1065 = vmatprep.subr.bf16.mxu0 %v936
    %1066 = vmatpush2.bf16.msra.mxu0 %v935
    %1067 = vmatprep.subr.bf16.mxu0 %v934
    %1068 = vmatpush2.bf16.msra.mxu0 %v933
    %1069 = vmatprep.subr.bf16.mxu0 %v932
    %1070 = vmatpush2.bf16.msra.mxu0 %v931
    %1071 = vmatprep.subr.bf16.mxu0 %v930
    %1072 = vmatpush2.bf16.msra.mxu0 %v929
    %1073 = vmatprep.mubr.bf16.mxu0 %v638
    %1074 = vmatmul.mubr.bf16.gmra.mxu0 %v637
    %v1075 = vpop.f32.mrf.mxu0
    %v1076 = vadd.f32 %v714, %v1075
    %v1077 = vpop.f32.mrf.mxu0
    %v1078 = vadd.f32 %v718, %v1077
    %v1079 = vpop.f32.mrf.mxu0
    %v1080 = vadd.f32 %v714, %v1079
    %v1081 = vpop.f32.mrf.mxu0
    %v1082 = vadd.f32 %v718, %v1081
    %1083 = vmatprep.mubr.bf16.mxu0 %v642
    %1084 = vmatmul.mubr.bf16.gmra.mxu0 %v641
    %v1085 = vpop.f32.mrf.mxu0
    %v1086 = vadd.f32 %v714, %v1085
    %v1087 = vpop.f32.mrf.mxu0
    %v1088 = vadd.f32 %v718, %v1087
    %v1089 = vpop.f32.mrf.mxu0
    %v1090 = vpop.f32.mrf.mxu0
    %1091 = vdwg.mxu0
    %1092 = vmatprep.subr.bf16.mxu0 %v960
    %1093 = vmatpush1.bf16.msra.mxu0 %v959
    %1094 = vmatprep.subr.bf16.mxu0 %v958
    %1095 = vmatpush1.bf16.msra.mxu0 %v957
    %1096 = vmatprep.subr.bf16.mxu0 %v956
    %1097 = vmatpush1.bf16.msra.mxu0 %v955
    %1098 = vmatprep.subr.bf16.mxu0 %v954
    %1099 = vmatpush1.bf16.msra.mxu0 %v953
    %1100 = vmatprep.subr.bf16.mxu0 %v952
    %1101 = vmatpush1.bf16.msra.mxu0 %v951
    %1102 = vmatprep.subr.bf16.mxu0 %v950
    %1103 = vmatpush1.bf16.msra.mxu0 %v949
    %1104 = vmatprep.subr.bf16.mxu0 %v948
    %1105 = vmatpush1.bf16.msra.mxu0 %v947
    %1106 = vmatprep.subr.bf16.mxu0 %v946
    %1107 = vmatpush1.bf16.msra.mxu0 %v945
    %1108 = vmatprep.subr.bf16.mxu0 %v976
    %1109 = vmatpush2.bf16.msra.mxu0 %v975
    %1110 = vmatprep.subr.bf16.mxu0 %v974
    %1111 = vmatpush2.bf16.msra.mxu0 %v973
    %1112 = vmatprep.subr.bf16.mxu0 %v972
    %1113 = vmatpush2.bf16.msra.mxu0 %v971
    %1114 = vmatprep.subr.bf16.mxu0 %v970
    %1115 = vmatpush2.bf16.msra.mxu0 %v969
    %1116 = vmatprep.subr.bf16.mxu0 %v968
    %1117 = vmatpush2.bf16.msra.mxu0 %v967
    %1118 = vmatprep.subr.bf16.mxu0 %v966
    %1119 = vmatpush2.bf16.msra.mxu0 %v965
    %1120 = vmatprep.subr.bf16.mxu0 %v964
    %1121 = vmatpush2.bf16.msra.mxu0 %v963
    %1122 = vmatprep.subr.bf16.mxu0 %v962
    %1123 = vmatpush2.bf16.msra.mxu0 %v961
    %1124 = vmatprep.mubr.bf16.mxu0 %v640
    %1125 = vmatmul.mubr.bf16.gmra.mxu0 %v639
    %v1126 = vpop.f32.mrf.mxu0
    %v1127 = vadd.f32 %v1076, %v1126
    %v1128 = vpop.f32.mrf.mxu0
    %v1129 = vadd.f32 %v1078, %v1128
    %v1130 = vpop.f32.mrf.mxu0
    %v1131 = vadd.f32 %v1080, %v1130
    %v1132 = vpop.f32.mrf.mxu0
    %v1133 = vadd.f32 %v1082, %v1132
    %1134 = vmatprep.mubr.bf16.mxu0 %v644
    %1135 = vmatmul.mubr.bf16.gmra.mxu0 %v643
    %v1136 = vpop.f32.mrf.mxu0
    %v1137 = vadd.f32 %v1086, %v1136
    %v1138 = vpop.f32.mrf.mxu0
    %v1139 = vadd.f32 %v1088, %v1138
    %v1140 = vpop.f32.mrf.mxu0
    %v1141 = vpop.f32.mrf.mxu0
    %1142 = vdwg.mxu0
    %v1143 = vadd.f32 %v1127, %v1129
    %1144 = vadd.xlane.f32.xlu0 %v1143
    %v1145 = vpop.xlane.xlu0 %1144
    %v1146 = vadd.f32 %v1131, %v1133
    %1147 = vadd.xlane.f32.xlu0 %v1146
    %v1148 = vpop.xlane.xlu0 %1147
    %v1149 = vadd.f32 %v1137, %v1139
    %1150 = vadd.xlane.f32.xlu0 %v1149
    %v1151 = vpop.xlane.xlu0 %1150
    %v1152 = vmul.f32 %v1145, 0.00390625
    %v1153 = vmul.f32 %v1148, 0.00390625
    %v1154 = vmul.f32 %v1151, 0.00390625
    %v1155 = vmul.f32 %v1127, %v1127
    %v1156 = vmul.f32 %v1129, %v1129
    %v1157 = vmul.f32 %v1131, %v1131
    %v1158 = vmul.f32 %v1133, %v1133
    %v1159 = vmul.f32 %v1137, %v1137
    %v1160 = vmul.f32 %v1139, %v1139
    %v1161 = vadd.f32 %v1155, %v1156
    %1162 = vadd.xlane.f32.xlu0 %v1161
    %v1163 = vpop.xlane.xlu0 %1162
    %v1164 = vadd.f32 %v1157, %v1158
    %1165 = vadd.xlane.f32.xlu0 %v1164
    %v1166 = vpop.xlane.xlu0 %1165
    %v1167 = vadd.f32 %v1159, %v1160
    %1168 = vadd.xlane.f32.xlu0 %v1167
    %v1169 = vpop.xlane.xlu0 %1168
    %v1170 = vmul.f32 %v1163, 0.00390625
    %v1171 = vmul.f32 %v1166, 0.00390625
    %v1172 = vmul.f32 %v1169, 0.00390625
    %v1173 = vmul.f32 %v1152, %v1152
    %v1174 = vmul.f32 %v1153, %v1153
    %v1175 = vmul.f32 %v1154, %v1154
    %v1176 = vsub.f32 %v1170, %v1173
    %v1177 = vsub.f32 %v1171, %v1174
    %v1178 = vsub.f32 %v1172, %v1175
    %v1179 = vmax.f32 %v1176, 0.0
    %v1180 = vmax.f32 %v1177, 0.0
    %v1181 = vmax.f32 %v1178, 0.0
    %v1182 = vsub.f32 %v1127, %v1152
    %v1183 = vsub.f32 %v1129, %v1152
    %v1184 = vsub.f32 %v1131, %v1153
    %v1185 = vsub.f32 %v1133, %v1153
    %v1186 = vsub.f32 %v1137, %v1154
    %v1187 = vsub.f32 %v1139, %v1154
    %v1188 = vadd.f32 %v1179, 1e-05
    %v1189 = vadd.f32 %v1180, 1e-05
    %v1190 = vadd.f32 %v1181, 1e-05
    %v1191 = vrsqrt.pop %v1188
    %v1192 = vrsqrt.pop %v1189
    %v1193 = vrsqrt.pop %v1190
    %v1194 = vmul.f32 %v1182, %v1191
    %v1195 = vmul.f32 %v1183, %v1191
    %v1196 = vmul.f32 %v1184, %v1192
    %v1197 = vmul.f32 %v1185, %v1192
    %v1198 = vmul.f32 %v1186, %v1193
    %v1199 = vmul.f32 %v1187, %v1193
    %v1200 = vld [vmem:[%s5] sm:$0x3]
    %v1202 = vlaneseq
    %v1203 = vshrl.u32 %v1202, 7
    %v1204 = vsub.s32 0, %v1203
    %v1205 = vrot.slane %v1200, %v1204
    %v1206 = vlaneseq
    %v1207 = vshrl.u32 %v1206, 7
    %v1208 = vsub.s32 1, %v1207
    %v1209 = vrot.slane %v1200, %v1208
    %v1212 = vmul.f32 %v1194, %v1205
    %v1213 = vmul.f32 %v1195, %v1209
    %v1214 = vmul.f32 %v1196, %v1205
    %v1215 = vmul.f32 %v1197, %v1209
    %v1216 = vmul.f32 %v1198, %v1205
    %v1217 = vmul.f32 %v1199, %v1209
    %v1218 = vld [vmem:[%s6] sm:$0x3]
    %v1220 = vlaneseq
    %v1221 = vshrl.u32 %v1220, 7
    %v1222 = vsub.s32 0, %v1221
    %v1223 = vrot.slane %v1218, %v1222
    %v1224 = vlaneseq
    %v1225 = vshrl.u32 %v1224, 7
    %v1226 = vsub.s32 1, %v1225
    %v1227 = vrot.slane %v1218, %v1226
    %v1230 = vadd.f32 %v1212, %v1223
    %v1231 = vadd.f32 %v1213, %v1227
    %v1232 = vadd.f32 %v1214, %v1223
    %v1233 = vadd.f32 %v1215, %v1227
    %v1234 = vadd.f32 %v1216, %v1223
    %v1235 = vadd.f32 %v1217, %v1227
    %v1236 = vpack.c.bf16 %v1232, %v1230
    %v1237 = vpack.c.bf16 %v1233, %v1231
    %v1238 = vpack.c.bf16 %v1234, %v1234
    %v1239 = vpack.c.bf16 %v1235, %v1235
    %v1240 = vld [vmem:[#allocation9] sm:$0xf]
    %v1241 = vld [vmem:[#allocation9 + $0x4] sm:$0xf]
    %v1242 = vld [vmem:[#allocation9 + $0x8] sm:$0xf]
    %v1243 = vld [vmem:[#allocation9 + $0xc] sm:$0xf]
    %v1244 = vld [vmem:[#allocation9 + $0x10] sm:$0xf]
    %v1245 = vld [vmem:[#allocation9 + $0x14] sm:$0xf]
    %v1246 = vld [vmem:[#allocation9 + $0x18] sm:$0xf]
    %v1247 = vld [vmem:[#allocation9 + $0x1c] sm:$0xf]
    %v1248 = vld [vmem:[#allocation9 + $0x20] sm:$0xf]
    %v1249 = vld [vmem:[#allocation9 + $0x24] sm:$0xf]
    %v1250 = vld [vmem:[#allocation9 + $0x28] sm:$0xf]
    %v1251 = vld [vmem:[#allocation9 + $0x2c] sm:$0xf]
    %v1252 = vld [vmem:[#allocation9 + $0x30] sm:$0xf]
    %v1253 = vld [vmem:[#allocation9 + $0x34] sm:$0xf]
    %v1254 = vld [vmem:[#allocation9 + $0x38] sm:$0xf]
    %v1255 = vld [vmem:[#allocation9 + $0x3c] sm:$0xf]
    %v1256 = vld [vmem:[#allocation9 + $0x40] sm:$0xf]
    %v1257 = vld [vmem:[#allocation9 + $0x44] sm:$0xf]
    %v1258 = vld [vmem:[#allocation9 + $0x48] sm:$0xf]
    %v1259 = vld [vmem:[#allocation9 + $0x4c] sm:$0xf]
    %v1260 = vld [vmem:[#allocation9 + $0x50] sm:$0xf]
    %v1261 = vld [vmem:[#allocation9 + $0x54] sm:$0xf]
    %v1262 = vld [vmem:[#allocation9 + $0x58] sm:$0xf]
    %v1263 = vld [vmem:[#allocation9 + $0x5c] sm:$0xf]
    %v1264 = vld [vmem:[#allocation9 + $0x60] sm:$0xf]
    %v1265 = vld [vmem:[#allocation9 + $0x64] sm:$0xf]
    %v1266 = vld [vmem:[#allocation9 + $0x68] sm:$0xf]
    %v1267 = vld [vmem:[#allocation9 + $0x6c] sm:$0xf]
    %v1268 = vld [vmem:[#allocation9 + $0x70] sm:$0xf]
    %v1269 = vld [vmem:[#allocation9 + $0x74] sm:$0xf]
    %v1270 = vld [vmem:[#allocation9 + $0x78] sm:$0xf]
    %v1271 = vld [vmem:[#allocation9 + $0x7c] sm:$0xf]
    %v1272 = vld [vmem:[%s8] sm:$0x1]
    %v1274 = vlaneseq
    %v1275 = vshrl.u32 %v1274, 7
    %v1276 = vsub.s32 0, %v1275
    %v1277 = vrot.slane %v1272, %v1276
    %v1311 = vunpack.c.l.b16 %v1240
    %v1312 = vunpack.c.l.b16 %v1241
    %v1313 = vunpack.c.l.b16 %v1242
    %v1314 = vunpack.c.l.b16 %v1243
    %v1315 = vunpack.c.l.b16 %v1244
    %v1316 = vunpack.c.l.b16 %v1245
    %v1317 = vunpack.c.l.b16 %v1246
    %v1318 = vunpack.c.l.b16 %v1247
    %v1319 = vunpack.c.l.b16 %v1248
    %v1320 = vunpack.c.l.b16 %v1249
    %v1321 = vunpack.c.l.b16 %v1250
    %v1322 = vunpack.c.l.b16 %v1251
    %v1323 = vunpack.c.l.b16 %v1252
    %v1324 = vunpack.c.l.b16 %v1253
    %v1325 = vunpack.c.l.b16 %v1254
    %v1326 = vunpack.c.l.b16 %v1255
    %v1327 = vunpack.c.l.b16 %v1256
    %v1328 = vunpack.c.l.b16 %v1257
    %v1329 = vunpack.c.l.b16 %v1258
    %v1330 = vunpack.c.l.b16 %v1259
    %v1331 = vunpack.c.l.b16 %v1260
    %v1332 = vunpack.c.l.b16 %v1261
    %v1333 = vunpack.c.l.b16 %v1262
    %v1334 = vunpack.c.l.b16 %v1263
    %v1335 = vunpack.c.l.b16 %v1264
    %v1336 = vunpack.c.l.b16 %v1265
    %v1337 = vunpack.c.l.b16 %v1266
    %v1338 = vunpack.c.l.b16 %v1267
    %v1339 = vunpack.c.l.b16 %v1268
    %v1340 = vunpack.c.l.b16 %v1269
    %v1341 = vunpack.c.l.b16 %v1270
    %v1342 = vunpack.c.l.b16 %v1271
    %v1343 = vpack.c.b16 %v1312, %v1311
    %v1344 = vpack.c.b16 %v1314, %v1313
    %v1345 = vpack.c.b16 %v1316, %v1315
    %v1346 = vpack.c.b16 %v1318, %v1317
    %v1347 = vpack.c.b16 %v1320, %v1319
    %v1348 = vpack.c.b16 %v1322, %v1321
    %v1349 = vpack.c.b16 %v1324, %v1323
    %v1350 = vpack.c.b16 %v1326, %v1325
    %v1351 = vpack.c.b16 %v1328, %v1327
    %v1352 = vpack.c.b16 %v1330, %v1329
    %v1353 = vpack.c.b16 %v1332, %v1331
    %v1354 = vpack.c.b16 %v1334, %v1333
    %v1355 = vpack.c.b16 %v1336, %v1335
    %v1356 = vpack.c.b16 %v1338, %v1337
    %v1357 = vpack.c.b16 %v1340, %v1339
    %v1358 = vpack.c.b16 %v1342, %v1341
    %1375 = vmatprep.subr.bf16.mxu0 0
    %1376 = vmatpush1.bf16.msra.mxu0 %v1350
    %1377 = vmatprep.subr.bf16.mxu0 0
    %1378 = vmatpush1.bf16.msra.mxu0 %v1349
    %1379 = vmatprep.subr.bf16.mxu0 0
    %1380 = vmatpush1.bf16.msra.mxu0 %v1348
    %1381 = vmatprep.subr.bf16.mxu0 0
    %1382 = vmatpush1.bf16.msra.mxu0 %v1347
    %1383 = vmatprep.subr.bf16.mxu0 0
    %1384 = vmatpush1.bf16.msra.mxu0 %v1346
    %1385 = vmatprep.subr.bf16.mxu0 0
    %1386 = vmatpush1.bf16.msra.mxu0 %v1345
    %1387 = vmatprep.subr.bf16.mxu0 0
    %1388 = vmatpush1.bf16.msra.mxu0 %v1344
    %1389 = vmatprep.subr.bf16.mxu0 0
    %1390 = vmatpush1.bf16.msra.mxu0 %v1343
    %1391 = vmatprep.subr.bf16.mxu0 0
    %1392 = vmatpush2.bf16.msra.mxu0 %v1358
    %1393 = vmatprep.subr.bf16.mxu0 0
    %1394 = vmatpush2.bf16.msra.mxu0 %v1357
    %1395 = vmatprep.subr.bf16.mxu0 0
    %1396 = vmatpush2.bf16.msra.mxu0 %v1356
    %1397 = vmatprep.subr.bf16.mxu0 0
    %1398 = vmatpush2.bf16.msra.mxu0 %v1355
    %1399 = vmatprep.subr.bf16.mxu0 0
    %1400 = vmatpush2.bf16.msra.mxu0 %v1354
    %1401 = vmatprep.subr.bf16.mxu0 0
    %1402 = vmatpush2.bf16.msra.mxu0 %v1353
    %1403 = vmatprep.subr.bf16.mxu0 0
    %1404 = vmatpush2.bf16.msra.mxu0 %v1352
    %1405 = vmatprep.subr.bf16.mxu0 0
    %1406 = vmatpush2.bf16.msra.mxu0 %v1351
    %1407 = vmatprep.mubr.bf16.mxu0 %v1237
    %1408 = vmatmul.mubr.bf16.gmra.mxu0 %v1236
    %v1409 = vpop.f32.mrf.mxu0
    %v1410 = vadd.f32 %v1277, %v1409
    %v1411 = vpop.f32.mrf.mxu0
    %v1412 = vpop.f32.mrf.mxu0
    %v1413 = vadd.f32 %v1277, %v1412
    %v1414 = vpop.f32.mrf.mxu0
    %1415 = vmatprep.mubr.bf16.mxu0 %v1239
    %1416 = vmatmul.mubr.bf16.gmra.mxu0 %v1238
    %v1417 = vpop.f32.mrf.mxu0
    %v1418 = vadd.f32 %v1277, %v1417
    %v1419 = vpop.f32.mrf.mxu0
    %v1420 = vpop.f32.mrf.mxu0
    %v1421 = vpop.f32.mrf.mxu0
    %1422 = vdwg.mxu0
    %v1423 = vmax.f32 %v1410, 0.0
    %v1424 = vmax.f32 %v1413, 0.0
    %v1425 = vmax.f32 %v1418, 0.0
    %v1426 = vld [vmem:[%s9] sm:$0x1]
    %v1428 = vlaneseq
    %v1429 = vshrl.u32 %v1428, 7
    %v1430 = vsub.s32 0, %v1429
    %v1431 = vrot.slane %v1426, %v1430
    %v1433 = vmul.f32 %v1423, %v1431
    %v1434 = vmul.f32 %v1424, %v1431
    %v1435 = vmul.f32 %v1425, %v1431
    %1436 = vadd.xlane.f32.xlu0 %v1433
    %v1437 = vpop.xlane.xlu0 %1436
    %1438 = vadd.xlane.f32.xlu0 %v1434
    %v1439 = vpop.xlane.xlu0 %1438
    %1440 = vadd.xlane.f32.xlu0 %v1435
    %v1441 = vpop.xlane.xlu0 %1440
    %v1442 = vld [vmem:[#allocation2] sm:$0x1]
    %1444 = vset.pattern.permute.xlu0 0
    %1445 = vperm.xlu0 %1444, %v1442
    %v1446 = vpop.permute.xlu0 %1445
    %v1448 = vlaneseq
    %v1449 = vshrl.u32 %v1448, 7
    %v1450 = vsub.s32 0, %v1449
    %v1451 = vrot.slane %v1446, %v1450
    %v1452 = vadd.f32 %v1437, %v1451
    %v1453 = vadd.f32 %v1439, %v1451
    %v1454 = vadd.f32 %v1441, %v1451
    %v1455 = vxor.u32 %v1452, 2147483648
    %v1456 = vxor.u32 %v1453, 2147483648
    %v1457 = vxor.u32 %v1454, 2147483648
    %v1458 = vmul.f32 %v1455, 1.442695
    %v1459 = vpow.pop %v1458
    %v1460 = vmul.f32 %v1456, 1.442695
    %v1461 = vpow.pop %v1460
    %v1462 = vmul.f32 %v1457, 1.442695
    %v1463 = vpow.pop %v1462
    %v1464 = vadd.f32 %v1459, 1.0
    %v1465 = vadd.f32 %v1461, 1.0
    %v1466 = vadd.f32 %v1463, 1.0
    %v1467 = vrcp.pop %v1464
    %v1468 = vmul.f32 1.0, %v1467
    %v1469 = vrcp.pop %v1465
    %v1470 = vmul.f32 1.0, %v1469
    %v1471 = vrcp.pop %v1466
    %v1472 = vmul.f32 1.0, %v1471
    %v1476 = vlaneseq
    %v1477 = vand.u32 %v1476, 127
    %v1478 = vlaneseq
    %v1479 = vshrl.u32 %v1478, 7
    %v1480 = vsub.s32 %v1477, %v1479
    %v1481 = vrot.slane %v1468, %v1480
    %v1482 = vadd.s32 %v1477, 4294967288
    %v1483 = vlaneseq
    %v1484 = vshrl.u32 %v1483, 7
    %v1485 = vsub.s32 %v1482, %v1484
    %v1486 = vrot.slane %v1470, %v1485
    %vm1487 = vcmask 130112
    %v1488 = vsel %vm1487, %v1486, %v1481
    %v1489 = vadd.s32 %v1477, 4294967280
    %v1490 = vlaneseq
    %v1491 = vshrl.u32 %v1490, 7
    %v1492 = vsub.s32 %v1489, %v1491
    %v1493 = vrot.slane %v1472, %v1492
    %vm1494 = vcmask 195712
    %v1495 = vsel %vm1494, %v1493, %v1488
    %vm1497 = vcmask 188416
    %1498 = vst.msk [vmem:[#allocation11] sm:$0x1] %vm1497, %v1495
    // Predicated region
    $region62: #{tpu_custom_call.1} parent=1 // pred_check
      _
    $region63: #{tpu_custom_call.1} parent=1 // pred_check_branch
      %1500 = sbr.rel (0) target = $region65
    $region64: #{tpu_custom_call.1} parent=1 // pred_region
      %s1502 = ssub.s32 16, 16
      %1503 = vsyncadd [#allocation5], %s1502
      %s1505 = sshll.u32 [#allocation11], 4
      %s1506 = int_to_ptr.vmem [resolvable:$true] %s1505
      %1508 = dma.vmem_to_hbm [thread:$0]  %s1506, 16, %s11, [#allocation5]
    $region65: #{tpu_custom_call.1} parent=1 // pred_fallthru
      _
    // Predicated region
    $region66: #{tpu_custom_call.1} parent=1 // pred_check
      _
    $region67: #{tpu_custom_call.1} parent=1 // pred_check_branch
      %1510 = sbr.rel (0) target = $region69
    $region68: #{tpu_custom_call.1} parent=1 // pred_region
      %1511 = dma.done [#allocation5], 16
    $region69: #{tpu_custom_call.1} parent=1 // pred_fallthru
      _
    %1512 = vsyncpa [#allocation4], 1
    %1513 = vsyncpa [#allocation7], 1
    %1514 = vsyncpa [#allocation10], 1
    %1515 = vsyncpa [#allocation5], 1

</llo_original>
